<compile_context>
chip_gen: v7x
topology: tpu7x:2x2x1
jax: 0.10.0
libtpu: 0.0.40
codegen_flags: <defaults>
</compile_context>

<pallas_src>
import numpy as np
import jax
import jax.numpy as jnp
from jax.experimental import pallas as pl
from jax.experimental.pallas import tpu as pltpu

# ---------------- config (small, consistent with the module) ----------------
DIM = 32                 # dim
NUM_HEADS = 2
WINDOW = 3               # window_size (3, 3)
NWIN = WINDOW * WINDOW   # tokens per window (N)
HEAD_DIM = DIM // NUM_HEADS
SCALE = HEAD_DIM ** (-0.5)
NEG_INF = -1e30
MAX_ROWS = 512           # bounds the O(rows^2) bias slab (v7x VMEM friendly)
COMPUTE_DTYPE = jnp.bfloat16


# ------------------------------ Pallas kernels --------------------------------
def _attention_core(q2, k2, v2, bias_ref, wproj_ref, bproj_ref):
    """q2/k2/v2: (rows, DIM) f32.  Returns the projected output (rows, DIM) f32."""
    y_acc = None
    for h in range(NUM_HEADS):
        sl = slice(h * HEAD_DIM, (h + 1) * HEAD_DIM)
        qh, kh, vh = q2[:, sl], k2[:, sl], v2[:, sl]
        # One (rows, rows) score matmul over the whole slab; cross-window
        # entries are killed by the -1e30 baked into bias_ref's off-diagonal
        # blocks (relative-position bias sits on the diagonal blocks).
        s = jax.lax.dot_general(qh, kh, (((1,), (1,)), ((), ())),
                                preferred_element_type=jnp.float32)
        s = s + bias_ref[h]
        s = s - jnp.max(s, axis=-1, keepdims=True)
        e = jnp.exp(s)
        p = e * pl.reciprocal(jnp.sum(e, axis=-1, keepdims=True), approx=True)
        oh = jnp.dot(p, vh, preferred_element_type=jnp.float32)      # (rows, hd)
        # Per-head partial projection: avoids the lane concat of head outputs.
        ph = jnp.dot(oh, wproj_ref[sl, :].astype(jnp.float32),
                     preferred_element_type=jnp.float32)             # (rows, DIM)
        y_acc = ph if y_acc is None else y_acc + ph
    return y_acc + bproj_ref[...]


def _kernel_self(x_ref, wqkv_ref, bqkv_ref, wproj_ref, bproj_ref, bias_ref,
                 out_ref):
    """Self-attention path (query is None).  out = [y | q_scaled], 64 lanes."""
    # One bf16 MXU matmul for fused QKV, f32 accumulation.  SCALE is already
    # folded into the Q columns of wqkv/bqkv (constant weight transform).
    qkv = (jnp.dot(x_ref[...], wqkv_ref[...],
                   preferred_element_type=jnp.float32) + bqkv_ref[...])
    q2 = qkv[:, 0:DIM]                       # scaled q (also returned)
    k2 = qkv[:, DIM:2 * DIM]
    v2 = qkv[:, 2 * DIM:3 * DIM]
    y = _attention_core(q2, k2, v2, bias_ref, wproj_ref, bproj_ref)
    # Single fused lane-dense store: one output stream instead of two.
    out_ref[...] = jnp.concatenate([y, q2], axis=-1)


def _kernel_extq(x_ref, q_ref, wkv_ref, bkv_ref, wproj_ref, bproj_ref,
                 bias_ref, y_ref):
    """External-query path: dead Q matmul skipped, K/V weights pre-sliced."""
    kv = (jnp.dot(x_ref[...], wkv_ref[...],
                  preferred_element_type=jnp.float32) + bkv_ref[...])
    k2 = kv[:, 0:DIM]
    v2 = kv[:, DIM:2 * DIM]
    q2 = q_ref[...].astype(jnp.float32)      # external query used as-is (module)
    y_ref[...] = _attention_core(q2, k2, v2, bias_ref, wproj_ref, bproj_ref)


# ------------------------------- wrapper --------------------------------------
def _choose_windows_per_step(num_windows: int) -> int:
    """Largest slab s.t. rows = wb*NWIN is sublane-legal for bf16 blocks
    (multiple of 16), stays <= MAX_ROWS, and (when possible) leaves >= 2 grid
    steps so the 'parallel' axis can be sharded across v7x's two TensorCores.
    On single-TC generations the one extra step costs only ~0.35us."""
    candidates = [c for c in range(1, num_windows + 1)
                  if num_windows % c == 0
                  and (c * NWIN) % 16 == 0
                  and c * NWIN <= MAX_ROWS]
    multi = [c for c in candidates if num_windows // c >= 2]
    if multi:
        return max(multi)
    if candidates:
        return max(candidates)
    return num_windows    # whole-array block (full dims are always legal)


def _expand_bias(rel_bias, wb):
    """(nh, NWIN, NWIN) relative-position bias -> block-diagonal
    (nh, wb*NWIN, wb*NWIN) slab with -1e30 on cross-window entries."""
    rows = wb * NWIN
    win_id = jnp.arange(rows) // NWIN
    same = win_id[:, None] == win_id[None, :]                 # (rows, rows)
    tiled = jnp.tile(rel_bias.astype(jnp.float32), (1, wb, wb))
    return jnp.where(same[None, :, :], tiled, NEG_INF)        # f32


def prepare_params(raw, num_windows, windows_per_step=None):
    """One-time (per wb) parameter prep, hoisted out of the jitted forward:
    scale fold, K/V pre-slice, bf16 weight casts, block-diagonal bias slab."""
    wb = windows_per_step or _choose_windows_per_step(num_windows)
    assert num_windows % wb == 0, (num_windows, wb)
    wqkv, bqkv = raw["wqkv"], raw["bqkv"]
    col_scale = jnp.concatenate(
        [jnp.full((DIM,), SCALE, jnp.float32),
         jnp.ones((2 * DIM,), jnp.float32)])[None, :]         # (1, 3*DIM)
    return dict(
        wb=wb,
        wqkv=(wqkv * col_scale).astype(COMPUTE_DTYPE),        # (DIM, 3*DIM)
        bqkv=(bqkv * col_scale).astype(jnp.float32),          # (1,  3*DIM)
        wkv=wqkv[:, DIM:].astype(COMPUTE_DTYPE),              # (DIM, 2*DIM)
        bkv=bqkv[:, DIM:].astype(jnp.float32),                # (1,  2*DIM)
        wproj=raw["wproj"].astype(COMPUTE_DTYPE),             # (DIM, DIM)
        bproj=raw["bproj"].astype(jnp.float32),               # (1, DIM)
        bias=_expand_bias(raw["rel_bias"], wb),               # (nh, rows, rows) f32
    )


def _full_spec(a):
    """Grid-invariant parameter block (block index never changes)."""
    return pl.BlockSpec(a.shape, lambda i, _nd=a.ndim: (0,) * _nd)


def window_attention(x, prepped, query=None):
    """x: (B_, N, C) float32.  query (optional): (B_, nh, N, hd).
    Returns (x_out, q) exactly like the PyTorch module."""
    B_, N, C = x.shape
    assert N == NWIN and C == DIM
    wb = prepped["wb"]
    assert B_ % wb == 0, (B_, wb)
    steps = B_ // wb
    rows = wb * NWIN

    x2 = x.reshape(B_ * NWIN, DIM).astype(COMPUTE_DTYPE)      # lane dim = C
    in_row_spec = pl.BlockSpec((rows, DIM), lambda i: (i, 0))
    cparams = pltpu.CompilerParams(
        dimension_semantics=("parallel",),
        vmem_limit_bytes=32 * 1024 * 1024)

    if query is None:
        params = (prepped["wqkv"], prepped["bqkv"], prepped["wproj"],
                  prepped["bproj"], prepped["bias"])
        out2 = pl.pallas_call(
            _kernel_self,
            grid=(steps,),
            in_specs=[in_row_spec] + [_full_spec(a) for a in params],
            out_specs=pl.BlockSpec((rows, 2 * DIM), lambda i: (i, 0)),
            out_shape=jax.ShapeDtypeStruct((B_ * NWIN, 2 * DIM), jnp.float32),
            compiler_params=cparams,
        )(x2, *params)
        y = out2[:, :DIM].reshape(B_, NWIN, DIM)
        q = (out2[:, DIM:].reshape(B_, NWIN, NUM_HEADS, HEAD_DIM)
             .transpose(0, 2, 1, 3))
        return y, q

    # external query: (B_, nh, N, hd) -> (B_*N, C), channel layout h*hd + d
    q2_in = (query.transpose(0, 2, 1, 3).reshape(B_ * NWIN, DIM)
             .astype(COMPUTE_DTYPE))
    params = (prepped["wkv"], prepped["bkv"], prepped["wproj"],
              prepped["bproj"], prepped["bias"])
    y2 = pl.pallas_call(
        _kernel_extq,
        grid=(steps,),
        in_specs=[in_row_spec, in_row_spec] + [_full_spec(a) for a in params],
        out_specs=pl.BlockSpec((rows, DIM), lambda i: (i, 0)),
        out_shape=jax.ShapeDtypeStruct((B_ * NWIN, DIM), jnp.float32),
        compiler_params=cparams,
    )(x2, q2_in, *params)
    return y2.reshape(B_, NWIN, DIM), query


# --------------------------- parameter initialization -------------------------
def compute_relative_position_index(ws):
    coords = np.stack(np.meshgrid(np.arange(ws), np.arange(ws), indexing="ij"))
    coords_flatten = coords.reshape(2, -1)
    rel = coords_flatten[:, :, None] - coords_flatten[:, None, :]
    rel = rel.transpose(1, 2, 0).astype(np.int64)
    rel[:, :, 0] += ws - 1
    rel[:, :, 1] += ws - 1
    rel[:, :, 0] *= 2 * ws - 1
    return rel.sum(-1)                                        # (NWIN, NWIN)


def init_params(key):
    ks = jax.random.split(key, 5)
    # relative position bias table (trunc_normal approximated by plain normal)
    table = jax.random.normal(ks[0], ((2 * WINDOW - 1) ** 2, NUM_HEADS),
                              jnp.float32) * 0.02
    idx = compute_relative_position_index(WINDOW).reshape(-1)
    rel_bias = table[idx].reshape(NWIN, NWIN, NUM_HEADS)
    rel_bias = jnp.transpose(rel_bias, (2, 0, 1))             # (nh, NWIN, NWIN)
    # packed qkv / proj linear layers, (in, out) layout for x @ W
    wqkv = jax.random.normal(ks[1], (DIM, 3 * DIM), jnp.float32) * DIM ** -0.5
    bqkv = jax.random.normal(ks[2], (1, 3 * DIM), jnp.float32) * 0.02
    wproj = jax.random.normal(ks[3], (DIM, DIM), jnp.float32) * DIM ** -0.5
    bproj = jax.random.normal(ks[4], (1, DIM), jnp.float32) * 0.02
    return dict(wqkv=wqkv, bqkv=bqkv, wproj=wproj, bproj=bproj,
                rel_bias=rel_bias)


# ----------------------------------- main --------------------------------------
if __name__ == "__main__":
    key = jax.random.PRNGKey(0)
    kx, kp = jax.random.split(key)

    B_ = 32                                  # num_windows * batch
    x = jax.random.normal(kx, (B_, NWIN, DIM), jnp.float32)
    params = init_params(kp)
    # One-time prep (outside jit): wb=16 -> rows=144, steps=2 for B_=32.
    prepped = prepare_params(params, num_windows=B_)

    fwd = jax.jit(lambda xx: window_attention(xx, prepped))
    y, q = jax.block_until_ready(fwd(x))
    assert y.shape == (B_, NWIN, DIM), y.shape
    assert q.shape == (B_, NUM_HEADS, NWIN, HEAD_DIM), q.shape
    assert bool(jnp.all(jnp.isfinite(y))) and bool(jnp.all(jnp.isfinite(q)))

    # exercise the external-query branch (query is used as-is, like the module)
    fwd_q = jax.jit(lambda xx, qq: window_attention(xx, prepped, query=qq))
    y2, q_ret = fwd_q(x, q)
    y2 = jax.block_until_ready(y2)
    assert y2.shape == (B_, NWIN, DIM), y2.shape
    assert bool(jnp.all(jnp.isfinite(y2)))

    print("KERNEL_OK")
</pallas_src>

<mosaic_0001>
module attributes {stable_mosaic.version = 11 : i64} {
  func.func @_kernel_self(%arg0: i32, %arg1: memref<144x32xbf16, #tpu.memory_space<vmem>>, %arg2: memref<32x96xbf16, #tpu.memory_space<vmem>>, %arg3: memref<1x96xf32, #tpu.memory_space<vmem>>, %arg4: memref<32x32xbf16, #tpu.memory_space<vmem>>, %arg5: memref<1x32xf32, #tpu.memory_space<vmem>>, %arg6: memref<2x144x144xf32, #tpu.memory_space<vmem>>, %arg7: memref<144x64xf32, #tpu.memory_space<vmem>>) attributes {dimension_semantics = [#tpu.dimension_semantics<parallel>], iteration_bounds = array<i64: 2>, scalar_prefetch = 0 : i64, scratch_operands = 0 : i64, tpu.core_type = #tpu.core_type<tc>, window_params = [{transform_indices = @transform_0, window_bounds = array<i64: 144, 32>}, {pipeline_mode = #tpu.pipeline_mode<synchronous>, transform_indices = @transform_1, window_bounds = array<i64: 32, 96>}, {pipeline_mode = #tpu.pipeline_mode<synchronous>, transform_indices = @transform_2, window_bounds = array<i64: 1, 96>}, {pipeline_mode = #tpu.pipeline_mode<synchronous>, transform_indices = @transform_3, window_bounds = array<i64: 32, 32>}, {pipeline_mode = #tpu.pipeline_mode<synchronous>, transform_indices = @transform_4, window_bounds = array<i64: 1, 32>}, {pipeline_mode = #tpu.pipeline_mode<synchronous>, transform_indices = @transform_5, window_bounds = array<i64: 2, 144, 144>}, {transform_indices = @transform_6, window_bounds = array<i64: 144, 64>}]} {
    %c0 = arith.constant 0 : index
    %c0_0 = arith.constant 0 : index
    %0 = vector.load %arg1[%c0, %c0_0] : memref<144x32xbf16, #tpu.memory_space<vmem>>, vector<144x32xbf16>
    %c0_1 = arith.constant 0 : index
    %c0_2 = arith.constant 0 : index
    %1 = vector.load %arg2[%c0_1, %c0_2] : memref<32x96xbf16, #tpu.memory_space<vmem>>, vector<32x96xbf16>
    %cst = arith.constant dense<0.000000e+00> : vector<144x96xf32>
    %2 = tpu.matmul %0, %1, %cst {dimension_numbers = #tpu.dot_dimension_numbers<[1], [0], [0], [1], [0, 0, 1, 1], [], []>} : vector<144x32xbf16>, vector<32x96xbf16>, vector<144x96xf32> -> vector<144x96xf32>
    %c0_3 = arith.constant 0 : index
    %c0_4 = arith.constant 0 : index
    %3 = vector.load %arg3[%c0_3, %c0_4] : memref<1x96xf32, #tpu.memory_space<vmem>>, vector<1x96xf32>
    %4 = vector.broadcast %3 : vector<1x96xf32> to vector<144x96xf32>
    %5 = arith.addf %2, %4 : vector<144x96xf32>
    %6 = vector.extract_strided_slice %5 {offsets = [0, 0], sizes = [144, 32], strides = [1, 1]} : vector<144x96xf32> to vector<144x32xf32>
    %7 = vector.extract_strided_slice %5 {offsets = [0, 32], sizes = [144, 32], strides = [1, 1]} : vector<144x96xf32> to vector<144x32xf32>
    %8 = vector.extract_strided_slice %5 {offsets = [0, 64], sizes = [144, 32], strides = [1, 1]} : vector<144x96xf32> to vector<144x32xf32>
    %9 = vector.extract_strided_slice %6 {offsets = [0, 0], sizes = [144, 16], strides = [1, 1]} : vector<144x32xf32> to vector<144x16xf32>
    %10 = vector.extract_strided_slice %7 {offsets = [0, 0], sizes = [144, 16], strides = [1, 1]} : vector<144x32xf32> to vector<144x16xf32>
    %11 = vector.extract_strided_slice %8 {offsets = [0, 0], sizes = [144, 16], strides = [1, 1]} : vector<144x32xf32> to vector<144x16xf32>
    %cst_5 = arith.constant dense<0.000000e+00> : vector<144x144xf32>
    %12 = tpu.matmul %9, %10, %cst_5 {dimension_numbers = #tpu.dot_dimension_numbers<[1], [1], [0], [0], [0, 0, 1, 0], [], []>} : vector<144x16xf32>, vector<144x16xf32>, vector<144x144xf32> -> vector<144x144xf32>
    %c0_6 = arith.constant 0 : index
    %c0_7 = arith.constant 0 : index
    %c0_8 = arith.constant 0 : index
    %13 = vector.load %arg6[%c0_6, %c0_7, %c0_8] : memref<2x144x144xf32, #tpu.memory_space<vmem>>, vector<1x144x144xf32>
    %14 = vector.shape_cast %13 : vector<1x144x144xf32> to vector<144x144xf32>
    %15 = arith.addf %12, %14 : vector<144x144xf32>
    %cst_9 = arith.constant dense<0xFF800000> : vector<144xf32>
    %16 = vector.multi_reduction <maximumf>, %15, %cst_9 [1] : vector<144x144xf32> to vector<144xf32>
    %17 = vector.shape_cast %16 : vector<144xf32> to vector<144x1xf32>
    %18 = vector.broadcast %17 : vector<144x1xf32> to vector<144x144xf32>
    %19 = arith.subf %15, %18 : vector<144x144xf32>
    %20 = math.exp %19 : vector<144x144xf32>
    %cst_10 = arith.constant dense<0.000000e+00> : vector<144xf32>
    %21 = vector.multi_reduction <add>, %20, %cst_10 [1] : vector<144x144xf32> to vector<144xf32>
    %22 = vector.shape_cast %21 : vector<144xf32> to vector<144x1xf32>
    %23 = tpu.reciprocal %22 {approx = true} : vector<144x1xf32> -> vector<144x1xf32>
    %24 = vector.broadcast %23 : vector<144x1xf32> to vector<144x144xf32>
    %25 = arith.mulf %20, %24 : vector<144x144xf32>
    %cst_11 = arith.constant dense<0.000000e+00> : vector<144x16xf32>
    %26 = tpu.matmul %25, %11, %cst_11 {dimension_numbers = #tpu.dot_dimension_numbers<[1], [0], [0], [1], [0, 0, 1, 1], [], []>} : vector<144x144xf32>, vector<144x16xf32>, vector<144x16xf32> -> vector<144x16xf32>
    %c0_12 = arith.constant 0 : index
    %c0_13 = arith.constant 0 : index
    %27 = vector.load %arg4[%c0_12, %c0_13] : memref<32x32xbf16, #tpu.memory_space<vmem>>, vector<16x32xbf16>
    %28 = arith.extf %27 : vector<16x32xbf16> to vector<16x32xf32>
    %cst_14 = arith.constant dense<0.000000e+00> : vector<144x32xf32>
    %29 = tpu.matmul %26, %28, %cst_14 {dimension_numbers = #tpu.dot_dimension_numbers<[1], [0], [0], [1], [0, 0, 1, 1], [], []>} : vector<144x16xf32>, vector<16x32xf32>, vector<144x32xf32> -> vector<144x32xf32>
    %30 = vector.extract_strided_slice %6 {offsets = [0, 16], sizes = [144, 16], strides = [1, 1]} : vector<144x32xf32> to vector<144x16xf32>
    %31 = vector.extract_strided_slice %7 {offsets = [0, 16], sizes = [144, 16], strides = [1, 1]} : vector<144x32xf32> to vector<144x16xf32>
    %32 = vector.extract_strided_slice %8 {offsets = [0, 16], sizes = [144, 16], strides = [1, 1]} : vector<144x32xf32> to vector<144x16xf32>
    %cst_15 = arith.constant dense<0.000000e+00> : vector<144x144xf32>
    %33 = tpu.matmul %30, %31, %cst_15 {dimension_numbers = #tpu.dot_dimension_numbers<[1], [1], [0], [0], [0, 0, 1, 0], [], []>} : vector<144x16xf32>, vector<144x16xf32>, vector<144x144xf32> -> vector<144x144xf32>
    %c1 = arith.constant 1 : index
    %c0_16 = arith.constant 0 : index
    %c0_17 = arith.constant 0 : index
    %34 = vector.load %arg6[%c1, %c0_16, %c0_17] : memref<2x144x144xf32, #tpu.memory_space<vmem>>, vector<1x144x144xf32>
    %35 = vector.shape_cast %34 : vector<1x144x144xf32> to vector<144x144xf32>
    %36 = arith.addf %33, %35 : vector<144x144xf32>
    %cst_18 = arith.constant dense<0xFF800000> : vector<144xf32>
    %37 = vector.multi_reduction <maximumf>, %36, %cst_18 [1] : vector<144x144xf32> to vector<144xf32>
    %38 = vector.shape_cast %37 : vector<144xf32> to vector<144x1xf32>
    %39 = vector.broadcast %38 : vector<144x1xf32> to vector<144x144xf32>
    %40 = arith.subf %36, %39 : vector<144x144xf32>
    %41 = math.exp %40 : vector<144x144xf32>
    %cst_19 = arith.constant dense<0.000000e+00> : vector<144xf32>
    %42 = vector.multi_reduction <add>, %41, %cst_19 [1] : vector<144x144xf32> to vector<144xf32>
    %43 = vector.shape_cast %42 : vector<144xf32> to vector<144x1xf32>
    %44 = tpu.reciprocal %43 {approx = true} : vector<144x1xf32> -> vector<144x1xf32>
    %45 = vector.broadcast %44 : vector<144x1xf32> to vector<144x144xf32>
    %46 = arith.mulf %41, %45 : vector<144x144xf32>
    %cst_20 = arith.constant dense<0.000000e+00> : vector<144x16xf32>
    %47 = tpu.matmul %46, %32, %cst_20 {dimension_numbers = #tpu.dot_dimension_numbers<[1], [0], [0], [1], [0, 0, 1, 1], [], []>} : vector<144x144xf32>, vector<144x16xf32>, vector<144x16xf32> -> vector<144x16xf32>
    %c16 = arith.constant 16 : index
    %c0_21 = arith.constant 0 : index
    %48 = vector.load %arg4[%c16, %c0_21] : memref<32x32xbf16, #tpu.memory_space<vmem>>, vector<16x32xbf16>
    %49 = arith.extf %48 : vector<16x32xbf16> to vector<16x32xf32>
    %cst_22 = arith.constant dense<0.000000e+00> : vector<144x32xf32>
    %50 = tpu.matmul %47, %49, %cst_22 {dimension_numbers = #tpu.dot_dimension_numbers<[1], [0], [0], [1], [0, 0, 1, 1], [], []>} : vector<144x16xf32>, vector<16x32xf32>, vector<144x32xf32> -> vector<144x32xf32>
    %51 = arith.addf %29, %50 : vector<144x32xf32>
    %c0_23 = arith.constant 0 : index
    %c0_24 = arith.constant 0 : index
    %52 = vector.load %arg5[%c0_23, %c0_24] : memref<1x32xf32, #tpu.memory_space<vmem>>, vector<1x32xf32>
    %53 = vector.broadcast %52 : vector<1x32xf32> to vector<144x32xf32>
    %54 = arith.addf %51, %53 : vector<144x32xf32>
    %55 = tpu.concatenate %54, %6 in 1 : vector<144x32xf32>, vector<144x32xf32> -> vector<144x64xf32>
    %c0_25 = arith.constant 0 : index
    %c0_26 = arith.constant 0 : index
    %56 = vector.load %arg7[%c0_25, %c0_26] : memref<144x64xf32, #tpu.memory_space<vmem>>, vector<144x64xf32>
    tpu.vector_store %arg7[%c0_25, %c0_26], %55 {strides = array<i32>} : memref<144x64xf32, #tpu.memory_space<vmem>>, vector<144x64xf32>,
    return
  }
  func.func @transform_0(%arg0: i32) -> (i32, i32) {
    %c0_i32 = arith.constant 0 : i32
    %c0_i32_0 = arith.constant 0 : i32
    return %arg0, %c0_i32 : i32, i32
  }
  func.func @transform_1(%arg0: i32) -> (i32, i32) {
    %c0_i32 = arith.constant 0 : i32
    %c0_i32_0 = arith.constant 0 : i32
    %c0_i32_1 = arith.constant 0 : i32
    return %c0_i32, %c0_i32_0 : i32, i32
  }
  func.func @transform_2(%arg0: i32) -> (i32, i32) {
    %c0_i32 = arith.constant 0 : i32
    %c0_i32_0 = arith.constant 0 : i32
    %c0_i32_1 = arith.constant 0 : i32
    return %c0_i32, %c0_i32_0 : i32, i32
  }
  func.func @transform_3(%arg0: i32) -> (i32, i32) {
    %c0_i32 = arith.constant 0 : i32
    %c0_i32_0 = arith.constant 0 : i32
    %c0_i32_1 = arith.constant 0 : i32
    return %c0_i32, %c0_i32_0 : i32, i32
  }
  func.func @transform_4(%arg0: i32) -> (i32, i32) {
    %c0_i32 = arith.constant 0 : i32
    %c0_i32_0 = arith.constant 0 : i32
    %c0_i32_1 = arith.constant 0 : i32
    return %c0_i32, %c0_i32_0 : i32, i32
  }
  func.func @transform_5(%arg0: i32) -> (i32, i32, i32) {
    %c0_i32 = arith.constant 0 : i32
    %c0_i32_0 = arith.constant 0 : i32
    %c0_i32_1 = arith.constant 0 : i32
    %c0_i32_2 = arith.constant 0 : i32
    return %c0_i32, %c0_i32_0, %c0_i32_1 : i32, i32, i32
  }
  func.func @transform_6(%arg0: i32) -> (i32, i32) {
    %c0_i32 = arith.constant 0 : i32
    %c0_i32_0 = arith.constant 0 : i32
    return %arg0, %c0_i32 : i32, i32
  }
}

</mosaic_0001>

<llo_original>
// kernel: _lambda_.1
$region0: #{_lambda_.1}
  #allocation0 [shape = 'u32[]', space=smem, size = 0x4, offset = 0x4, fixed_abs, tag = 'smem constant byte address 0x4 - core index']
  #allocation1 [shape = 'u32[144,128]{1,0:T(1,128)}', space=vmem, size = 0x12000, scoped, tag = 'internal scratch']
  %s0 = inlined_call_operand.vmem [shape: bf16[288,32], index: 0, kind: input, shape index: {}]
  %s1 = inlined_call_operand.vmem [shape: bf16[32,96], index: 1, kind: input, shape index: {}]
  %s2 = inlined_call_operand.vmem [shape: f32[1,96], index: 2, kind: input, shape index: {}]
  %s3 = inlined_call_operand.vmem [shape: bf16[32,32], index: 3, kind: input, shape index: {}]
  %s4 = inlined_call_operand.vmem [shape: f32[1,32], index: 4, kind: input, shape index: {}]
  %s5 = inlined_call_operand.vmem [shape: f32[2,144,144], index: 5, kind: input, shape index: {}]
  %s6 = inlined_call_operand.vmem [shape: f32[288,64], index: 6, kind: output, shape index: {}]
  %s7 = sld [smem:[#allocation0]]
  $region57: #{_lambda_.1} parent=0
    _
  %s9 = ssub.s32 1, %s7
  %s10 = scalar_select 0, %s9, %s7
  loop: start=0, step=1, limit=4
  $region2: #{_lambda_.1} parent=0 // loop_pre_header
    _
  $region3: #{_lambda_.1} parent=0 // loop_header
    %s12 = sphi 0, %s16
    %p13 = scmp.ge.s32.totalorder %s12, 4
    %s22 = sphi 0, %s24
    %s25 = sphi 0, %s22
    %s26 = sphi 0, %s25
    %s42 = sphi 0, %s26
    %s46 = sphi 0, %s46
    %s48 = sphi 0, %s46
    %s49 = sphi 0, %s48
    %s63 = sphi 0, %s49
    %s67 = sphi 0, %s67
    %s69 = sphi 0, %s67
    %s70 = sphi 0, %s69
    %s84 = sphi 0, %s70
    %s88 = sphi 0, %s88
    %s90 = sphi 0, %s88
    %s91 = sphi 0, %s90
    %s105 = sphi 0, %s91
    %s109 = sphi 0, %s109
    %s111 = sphi 0, %s109
    %s112 = sphi 0, %s111
    %s126 = sphi 0, %s112
    %s130 = sphi 0, %s130
    %s132 = sphi 0, %s130
    %s133 = sphi 0, %s132
    %s147 = sphi 0, %s133
    %s153 = sphi 0, %s155
    %s156 = sphi 0, %s153
    %s157 = sphi 0, %s156
    %s173 = sphi 0, %s157
  $region4: #{_lambda_.1} parent=0 // loop_header_branch
    %15 = sbr.rel (%p13) target = $region8
  $region5: #{_lambda_.1} parent=0 // loop_body
    %s17 = ssub.s32 %s12, 1
    %s18 = ssub.s32 %s12, 2
    %s19 = sadd.s32 %s12, 1
    %s20 = ssub.s32 %s12, %s19
    %p21 = scmp.eq.s32.totalorder %s20, 0
    %s23 = sadd.s32 %s22, 1
    %s24 = scalar_select %p21, %s22, %s23
    %p27 = pneg %p21
    %p28 = scmp.eq.s32.totalorder %s12, 1
    %p29 = por %p27, %p28
    %p30 = scmp.ne.s32.totalorder %s22, %s25
    %p31 = scmp.eq.s32.totalorder %s12, 0
    %p32 = por %p30, %p31
    %p33 = scmp.ne.s32.totalorder %s22, %s25
    %p34 = scmp.eq.s32.totalorder %s17, 1
    %p35 = por %p33, %p34
    %p36 = scmp.ne.s32.totalorder %s25, %s26
    %p37 = scmp.eq.s32.totalorder %s17, 0
    %p38 = por %p36, %p37
    %p39 = scmp.ne.s32.totalorder %s25, %s26
    %p40 = scmp.eq.s32.totalorder %s18, 1
    %p41 = por %p39, %p40
    %p43 = scmp.ne.s32.totalorder %s26, %s42
    %p44 = scmp.eq.s32.totalorder %s18, 0
    %p45 = por %p43, %p44
    %s47 = sadd.s32 %s46, 1
    %p50 = scmp.eq.s32.totalorder %s12, 1
    %p51 = scmp.ne.s32.totalorder %s46, %s48
    %p52 = scmp.eq.s32.totalorder %s12, 0
    %p53 = por %p51, %p52
    %p54 = scmp.ne.s32.totalorder %s46, %s48
    %p55 = scmp.eq.s32.totalorder %s17, 1
    %p56 = por %p54, %p55
    %p57 = scmp.ne.s32.totalorder %s48, %s49
    %p58 = scmp.eq.s32.totalorder %s17, 0
    %p59 = por %p57, %p58
    %p60 = scmp.ne.s32.totalorder %s48, %s49
    %p61 = scmp.eq.s32.totalorder %s18, 1
    %p62 = por %p60, %p61
    %p64 = scmp.ne.s32.totalorder %s49, %s63
    %p65 = scmp.eq.s32.totalorder %s18, 0
    %p66 = por %p64, %p65
    %s68 = sadd.s32 %s67, 1
    %p71 = scmp.eq.s32.totalorder %s12, 1
    %p72 = scmp.ne.s32.totalorder %s67, %s69
    %p73 = scmp.eq.s32.totalorder %s12, 0
    %p74 = por %p72, %p73
    %p75 = scmp.ne.s32.totalorder %s67, %s69
    %p76 = scmp.eq.s32.totalorder %s17, 1
    %p77 = por %p75, %p76
    %p78 = scmp.ne.s32.totalorder %s69, %s70
    %p79 = scmp.eq.s32.totalorder %s17, 0
    %p80 = por %p78, %p79
    %p81 = scmp.ne.s32.totalorder %s69, %s70
    %p82 = scmp.eq.s32.totalorder %s18, 1
    %p83 = por %p81, %p82
    %p85 = scmp.ne.s32.totalorder %s70, %s84
    %p86 = scmp.eq.s32.totalorder %s18, 0
    %p87 = por %p85, %p86
    %s89 = sadd.s32 %s88, 1
    %p92 = scmp.eq.s32.totalorder %s12, 1
    %p93 = scmp.ne.s32.totalorder %s88, %s90
    %p94 = scmp.eq.s32.totalorder %s12, 0
    %p95 = por %p93, %p94
    %p96 = scmp.ne.s32.totalorder %s88, %s90
    %p97 = scmp.eq.s32.totalorder %s17, 1
    %p98 = por %p96, %p97
    %p99 = scmp.ne.s32.totalorder %s90, %s91
    %p100 = scmp.eq.s32.totalorder %s17, 0
    %p101 = por %p99, %p100
    %p102 = scmp.ne.s32.totalorder %s90, %s91
    %p103 = scmp.eq.s32.totalorder %s18, 1
    %p104 = por %p102, %p103
    %p106 = scmp.ne.s32.totalorder %s91, %s105
    %p107 = scmp.eq.s32.totalorder %s18, 0
    %p108 = por %p106, %p107
    %s110 = sadd.s32 %s109, 1
    %p113 = scmp.eq.s32.totalorder %s12, 1
    %p114 = scmp.ne.s32.totalorder %s109, %s111
    %p115 = scmp.eq.s32.totalorder %s12, 0
    %p116 = por %p114, %p115
    %p117 = scmp.ne.s32.totalorder %s109, %s111
    %p118 = scmp.eq.s32.totalorder %s17, 1
    %p119 = por %p117, %p118
    %p120 = scmp.ne.s32.totalorder %s111, %s112
    %p121 = scmp.eq.s32.totalorder %s17, 0
    %p122 = por %p120, %p121
    %p123 = scmp.ne.s32.totalorder %s111, %s112
    %p124 = scmp.eq.s32.totalorder %s18, 1
    %p125 = por %p123, %p124
    %p127 = scmp.ne.s32.totalorder %s112, %s126
    %p128 = scmp.eq.s32.totalorder %s18, 0
    %p129 = por %p127, %p128
    %s131 = sadd.s32 %s130, 1
    %p134 = scmp.eq.s32.totalorder %s12, 1
    %p135 = scmp.ne.s32.totalorder %s130, %s132
    %p136 = scmp.eq.s32.totalorder %s12, 0
    %p137 = por %p135, %p136
    %p138 = scmp.ne.s32.totalorder %s130, %s132
    %p139 = scmp.eq.s32.totalorder %s17, 1
    %p140 = por %p138, %p139
    %p141 = scmp.ne.s32.totalorder %s132, %s133
    %p142 = scmp.eq.s32.totalorder %s17, 0
    %p143 = por %p141, %p142
    %p144 = scmp.ne.s32.totalorder %s132, %s133
    %p145 = scmp.eq.s32.totalorder %s18, 1
    %p146 = por %p144, %p145
    %p148 = scmp.ne.s32.totalorder %s133, %s147
    %p149 = scmp.eq.s32.totalorder %s18, 0
    %p150 = por %p148, %p149
    %s151 = ssub.s32 %s12, %s19
    %p152 = scmp.eq.s32.totalorder %s151, 0
    %s154 = sadd.s32 %s153, 1
    %s155 = scalar_select %p152, %s153, %s154
    %p158 = pneg %p152
    %p159 = scmp.eq.s32.totalorder %s12, 1
    %p160 = por %p158, %p159
    %p161 = scmp.ne.s32.totalorder %s153, %s156
    %p162 = scmp.eq.s32.totalorder %s12, 0
    %p163 = por %p161, %p162
    %p164 = scmp.ne.s32.totalorder %s153, %s156
    %p165 = scmp.eq.s32.totalorder %s17, 1
    %p166 = por %p164, %p165
    %p167 = scmp.ne.s32.totalorder %s156, %s157
    %p168 = scmp.eq.s32.totalorder %s17, 0
    %p169 = por %p167, %p168
    %p170 = scmp.ne.s32.totalorder %s156, %s157
    %p171 = scmp.eq.s32.totalorder %s18, 1
    %p172 = por %p170, %p171
    %p174 = scmp.ne.s32.totalorder %s157, %s173
    %p175 = scmp.eq.s32.totalorder %s18, 0
    %p176 = por %p174, %p175
    %p177 = scmp.le.s32.totalorder 1, %s12
    %p178 = scmp.lt.s32.totalorder %s12, 3
    %p179 = pnand %p177, %p178
    %p180 = pneg %p179
    // Predicated region
    $region9: #{_lambda_.1} parent=5 // pred_check
      _
    $region10: #{_lambda_.1} parent=5 // pred_check_branch
      %182 = sbr.rel (%p179) target = $region12
    $region11: #{_lambda_.1} parent=5 // pred_region
      %s183 = ssub.s32 %s12, 1
      // Predicated region
      $region13: #{_lambda_.1} parent=11 // pred_check
        %p184 = pneg %p59
      $region14: #{_lambda_.1} parent=11 // pred_check_branch
        %186 = sbr.rel (%p184) target = $region16
      $region15: #{_lambda_.1} parent=11 // pred_region
        _
      $region16: #{_lambda_.1} parent=11 // pred_fallthru
        _
      // Predicated region
      $region17: #{_lambda_.1} parent=11 // pred_check
        %p187 = pneg %p80
      $region18: #{_lambda_.1} parent=11 // pred_check_branch
        %189 = sbr.rel (%p187) target = $region20
      $region19: #{_lambda_.1} parent=11 // pred_region
        _
      $region20: #{_lambda_.1} parent=11 // pred_fallthru
        _
      // Predicated region
      $region21: #{_lambda_.1} parent=11 // pred_check
        %p190 = pneg %p101
      $region22: #{_lambda_.1} parent=11 // pred_check_branch
        %192 = sbr.rel (%p190) target = $region24
      $region23: #{_lambda_.1} parent=11 // pred_region
        _
      $region24: #{_lambda_.1} parent=11 // pred_fallthru
        _
      // Predicated region
      $region25: #{_lambda_.1} parent=11 // pred_check
        %p193 = pneg %p122
      $region26: #{_lambda_.1} parent=11 // pred_check_branch
        %195 = sbr.rel (%p193) target = $region28
      $region27: #{_lambda_.1} parent=11 // pred_region
        _
      $region28: #{_lambda_.1} parent=11 // pred_fallthru
        _
      // Predicated region
      $region29: #{_lambda_.1} parent=11 // pred_check
        %p196 = pneg %p143
      $region30: #{_lambda_.1} parent=11 // pred_check_branch
        %198 = sbr.rel (%p196) target = $region32
      $region31: #{_lambda_.1} parent=11 // pred_region
        _
      $region32: #{_lambda_.1} parent=11 // pred_fallthru
        _
    $region12: #{_lambda_.1} parent=5 // pred_fallthru
      _
    %p199 = scmp.lt.s32.totalorder %s12, 2
    // Predicated region
    $region33: #{_lambda_.1} parent=5 // pred_check
      %p200 = pneg %p199
    $region34: #{_lambda_.1} parent=5 // pred_check_branch
      %202 = sbr.rel (%p200) target = $region36
    $region35: #{_lambda_.1} parent=5 // pred_region
      // Predicated region
      $region37: #{_lambda_.1} parent=35 // pred_check
        %p203 = pneg %p32
      $region38: #{_lambda_.1} parent=35 // pred_check_branch
        %205 = sbr.rel (%p203) target = $region40
      $region39: #{_lambda_.1} parent=35 // pred_region
        %s206 = smul.u32 18, %s12
        %p207 = scmp.lt.s32.totalorder %s206, 35
        %s208 = scalar_select %p207, %s206, 35
        %s209 = smul.addr %s208, 4
        %s210 = scalar_lea.vmem %s0, %s209
        %s211 = smul.u32 18, %s12
      $region40: #{_lambda_.1} parent=35 // pred_fallthru
        _
    $region36: #{_lambda_.1} parent=5 // pred_fallthru
      _
    %p212 = scmp.le.s32.totalorder 1, %s12
    %p213 = scmp.lt.s32.totalorder %s12, 3
    %p214 = pnand %p212, %p213
    %p215 = pneg %p214
    // Predicated region
    $region41: #{_lambda_.1} parent=5 // pred_check
      _
    $region42: #{_lambda_.1} parent=5 // pred_check_branch
      %217 = sbr.rel (%p214) target = $region44
    $region43: #{_lambda_.1} parent=5 // pred_region
      %s218 = ssub.s32 %s12, 1
      %s219 = smul.u32 18, %s17
      %p220 = scmp.lt.s32.totalorder %s219, 35
      %s221 = scalar_select %p220, %s219, 35
      %s222 = smul.addr %s221, 4
      %s223 = scalar_lea.vmem %s0, %s222
      %p224 = pneg %p38
      %p225 = pneg %p35
      %p226 = pneg %p59
      %p227 = pneg %p56
      %p228 = pneg %p80
      %p229 = pneg %p77
      %p230 = pneg %p101
      %p231 = pneg %p98
      %p232 = pneg %p122
      %p233 = pneg %p119
      %p234 = pneg %p143
      %p235 = pneg %p140
      %p236 = pneg %p169
      %p237 = pneg %p166
      %s238 = smul.u32 18, %s17
      %p239 = scmp.lt.s32.totalorder %s238, 35
      %s240 = scalar_select %p239, %s238, 35
      %s241 = smul.addr %s240, 8
      %s242 = scalar_lea.vmem %s6, %s241
      %s243 = smul.u32 18, %s17
      %p244 = scmp.lt.s32.totalorder %s243, 35
      %s245 = scalar_select %p244, %s243, 35
      %s246 = smul.addr %s245, 4
      %s247 = scalar_lea.vmem %s0, %s246
      %s248 = smul.u32 18, %s17
      %s249 = smul.u32 18, %s17
      %p250 = scmp.lt.s32.totalorder %s249, 35
      %s251 = scalar_select %p250, %s249, 35
      %s252 = smul.addr %s251, 8
      %s253 = scalar_lea.vmem %s6, %s252
      %s254 = smul.u32 18, %s17
      %v256 = vld [vmem:[%s247] sm:$0xf]
      %v257 = vld [vmem:[%s247 + $0x4] sm:$0xf]
      %v258 = vld [vmem:[%s247 + $0x8] sm:$0xf]
      %v259 = vld [vmem:[%s247 + $0xc] sm:$0xf]
      %v260 = vld [vmem:[%s247 + $0x10] sm:$0xf]
      %v261 = vld [vmem:[%s247 + $0x14] sm:$0xf]
      %v262 = vld [vmem:[%s247 + $0x18] sm:$0xf]
      %v263 = vld [vmem:[%s247 + $0x1c] sm:$0xf]
      %v264 = vld [vmem:[%s247 + $0x20] sm:$0xf]
      %v265 = vld [vmem:[%s247 + $0x24] sm:$0xf]
      %v266 = vld [vmem:[%s247 + $0x28] sm:$0xf]
      %v267 = vld [vmem:[%s247 + $0x2c] sm:$0xf]
      %v268 = vld [vmem:[%s247 + $0x30] sm:$0xf]
      %v269 = vld [vmem:[%s247 + $0x34] sm:$0xf]
      %v270 = vld [vmem:[%s247 + $0x38] sm:$0xf]
      %v271 = vld [vmem:[%s247 + $0x3c] sm:$0xf]
      %v272 = vld [vmem:[%s247 + $0x40] sm:$0xf]
      %v273 = vld [vmem:[%s247 + $0x44] sm:$0xf]
      %v274 = vld [vmem:[%s1] sm:$0xf]
      %v275 = vld [vmem:[%s1 + $0x4] sm:$0xf]
      %v276 = vld [vmem:[%s1 + $0x8] sm:$0xf]
      %v277 = vld [vmem:[%s1 + $0xc] sm:$0xf]
      %v278 = vld [vmem:[%s2] sm:$0x1]
      %v280 = vlaneseq
      %v281 = vshrl.u32 %v280, 7
      %v282 = vsub.s32 0, %v281
      %v283 = vrot.slane %v278, %v282
      %v303 = vunpack.c.l.b16 %v256
      %v304 = vunpack.c.l.b16 %v257
      %v305 = vunpack.c.l.b16 %v258
      %v306 = vunpack.c.l.b16 %v259
      %v307 = vunpack.c.l.b16 %v260
      %v308 = vunpack.c.l.b16 %v261
      %v309 = vunpack.c.l.b16 %v262
      %v310 = vunpack.c.l.b16 %v263
      %v311 = vunpack.c.l.b16 %v264
      %v312 = vunpack.c.l.b16 %v265
      %v313 = vunpack.c.l.b16 %v266
      %v314 = vunpack.c.l.b16 %v267
      %v315 = vunpack.c.l.b16 %v268
      %v316 = vunpack.c.l.b16 %v269
      %v317 = vunpack.c.l.b16 %v270
      %v318 = vunpack.c.l.b16 %v271
      %v319 = vunpack.c.l.b16 %v272
      %v320 = vunpack.c.l.b16 %v273
      %v321 = vpack.c.b16 %v304, %v303
      %v322 = vpack.c.b16 %v306, %v305
      %v323 = vpack.c.b16 %v308, %v307
      %v324 = vpack.c.b16 %v310, %v309
      %v325 = vpack.c.b16 %v312, %v311
      %v326 = vpack.c.b16 %v314, %v313
      %v327 = vpack.c.b16 %v316, %v315
      %v328 = vpack.c.b16 %v318, %v317
      %v329 = vpack.c.b16 %v320, %v319
      %v334 = vunpack.c.l.b16 %v274
      %v335 = vunpack.c.l.b16 %v275
      %v336 = vunpack.c.l.b16 %v276
      %v337 = vunpack.c.l.b16 %v277
      %v338 = vpack.c.b16 %v335, %v334
      %v339 = vpack.c.b16 %v337, %v336
      %vm342 = vcmask 261120
      %v344 = vsel %vm342, %v321, 0
      %v347 = vsel %vm342, %v322, 0
      %v350 = vsel %vm342, %v323, 0
      %v353 = vsel %vm342, %v324, 0
      %v356 = vsel %vm342, %v325, 0
      %v359 = vsel %vm342, %v326, 0
      %v362 = vsel %vm342, %v327, 0
      %v365 = vsel %vm342, %v328, 0
      %v368 = vsel %vm342, %v329, 0
      %370 = vmatprep.subr.bf16.mxu0 0
      %371 = vmatpush1.bf16.msra.mxu0 %v338
      %372 = vmatprep.subr.bf16.mxu0 0
      %373 = vmatpush1.bf16.msra.mxu0 %v339
      %374 = vmatprep.subr.bf16.mxu0 0
      %375 = vmatpush1.bf16.msra.mxu0 0
      %376 = vmatprep.subr.bf16.mxu0 0
      %377 = vmatpush1.bf16.msra.mxu0 0
      %378 = vmatprep.subr.bf16.mxu0 0
      %379 = vmatpush1.bf16.msra.mxu0 0
      %380 = vmatprep.subr.bf16.mxu0 0
      %381 = vmatpush1.bf16.msra.mxu0 0
      %382 = vmatprep.subr.bf16.mxu0 0
      %383 = vmatpush1.bf16.msra.mxu0 0
      %384 = vmatprep.subr.bf16.mxu0 0
      %385 = vmatpush1.bf16.msra.mxu0 0
      %386 = vmatprep.subr.bf16.mxu0 0
      %387 = vmatpush1.bf16.msra.mxu0 0
      %388 = vmatprep.subr.bf16.mxu0 0
      %389 = vmatpush1.bf16.msra.mxu0 0
      %390 = vmatprep.subr.bf16.mxu0 0
      %391 = vmatpush1.bf16.msra.mxu0 0
      %392 = vmatprep.subr.bf16.mxu0 0
      %393 = vmatpush1.bf16.msra.mxu0 0
      %394 = vmatprep.subr.bf16.mxu0 0
      %395 = vmatpush1.bf16.msra.mxu0 0
      %396 = vmatprep.subr.bf16.mxu0 0
      %397 = vmatpush1.bf16.msra.mxu0 0
      %398 = vmatprep.subr.bf16.mxu0 0
      %399 = vmatpush1.bf16.msra.mxu0 0
      %400 = vmatprep.subr.bf16.mxu0 0
      %401 = vmatpush1.bf16.msra.mxu0 0
      %402 = vmatprep.mubr.bf16.mxu0 0
      %403 = vmatmul.mubr.bf16.gmra.mrb[0].mxu0 %v344
      %v404 = vpop.f32.mrb[0].mxu0
      %v405 = vadd.f32 %v283, %v404
      %v406 = vpop.f32.mrb[0].mxu0
      %v407 = vpop.f32.mrb[0].mxu0
      %v408 = vadd.f32 %v283, %v407
      %v409 = vpop.f32.mrb[0].mxu0
      %410 = vmatprep.mubr.bf16.mxu0 0
      %411 = vmatmul.mubr.bf16.gmra.mrb[0].mxu0 %v347
      %v412 = vpop.f32.mrb[0].mxu0
      %v413 = vadd.f32 %v283, %v412
      %v414 = vpop.f32.mrb[0].mxu0
      %v415 = vpop.f32.mrb[0].mxu0
      %v416 = vadd.f32 %v283, %v415
      %v417 = vpop.f32.mrb[0].mxu0
      %418 = vmatprep.mubr.bf16.mxu0 0
      %419 = vmatmul.mubr.bf16.gmra.mrb[0].mxu0 %v350
      %v420 = vpop.f32.mrb[0].mxu0
      %v421 = vadd.f32 %v283, %v420
      %v422 = vpop.f32.mrb[0].mxu0
      %v423 = vpop.f32.mrb[0].mxu0
      %v424 = vadd.f32 %v283, %v423
      %v425 = vpop.f32.mrb[0].mxu0
      %426 = vmatprep.mubr.bf16.mxu0 0
      %427 = vmatmul.mubr.bf16.gmra.mrb[0].mxu0 %v353
      %v428 = vpop.f32.mrb[0].mxu0
      %v429 = vadd.f32 %v283, %v428
      %v430 = vpop.f32.mrb[0].mxu0
      %v431 = vpop.f32.mrb[0].mxu0
      %v432 = vadd.f32 %v283, %v431
      %v433 = vpop.f32.mrb[0].mxu0
      %434 = vmatprep.mubr.bf16.mxu0 0
      %435 = vmatmul.mubr.bf16.gmra.mrb[0].mxu0 %v356
      %v436 = vpop.f32.mrb[0].mxu0
      %v437 = vadd.f32 %v283, %v436
      %v438 = vpop.f32.mrb[0].mxu0
      %v439 = vpop.f32.mrb[0].mxu0
      %v440 = vadd.f32 %v283, %v439
      %v441 = vpop.f32.mrb[0].mxu0
      %442 = vmatprep.mubr.bf16.mxu0 0
      %443 = vmatmul.mubr.bf16.gmra.mrb[0].mxu0 %v359
      %v444 = vpop.f32.mrb[0].mxu0
      %v445 = vadd.f32 %v283, %v444
      %v446 = vpop.f32.mrb[0].mxu0
      %v447 = vpop.f32.mrb[0].mxu0
      %v448 = vadd.f32 %v283, %v447
      %v449 = vpop.f32.mrb[0].mxu0
      %450 = vmatprep.mubr.bf16.mxu0 0
      %451 = vmatmul.mubr.bf16.gmra.mrb[0].mxu0 %v362
      %v452 = vpop.f32.mrb[0].mxu0
      %v453 = vadd.f32 %v283, %v452
      %v454 = vpop.f32.mrb[0].mxu0
      %v455 = vpop.f32.mrb[0].mxu0
      %v456 = vadd.f32 %v283, %v455
      %v457 = vpop.f32.mrb[0].mxu0
      %458 = vmatprep.mubr.bf16.mxu0 0
      %459 = vmatmul.mubr.bf16.gmra.mrb[0].mxu0 %v365
      %v460 = vpop.f32.mrb[0].mxu0
      %v461 = vadd.f32 %v283, %v460
      %v462 = vpop.f32.mrb[0].mxu0
      %v463 = vpop.f32.mrb[0].mxu0
      %v464 = vadd.f32 %v283, %v463
      %v465 = vpop.f32.mrb[0].mxu0
      %466 = vmatprep.mubr.bf16.mxu0 0
      %467 = vmatmul.mubr.bf16.gmra.mrb[0].mxu0 %v368
      %v468 = vpop.f32.mrb[0].mxu0
      %v469 = vadd.f32 %v283, %v468
      %v470 = vpop.f32.mrb[0].mxu0
      %v471 = vpop.f32.mrb[0].mxu0
      %v472 = vadd.f32 %v283, %v471
      %v473 = vpop.f32.mrb[0].mxu0
      %474 = vdwg.mxu0
      %v475 = vld [vmem:[%s5] sm:$0xff]
      %v476 = vld [vmem:[%s5 + $0x8] sm:$0xff]
      %v477 = vld [vmem:[%s5 + $0x10] sm:$0xff]
      %v478 = vld [vmem:[%s5 + $0x18] sm:$0xff]
      %v479 = vld [vmem:[%s5 + $0x20] sm:$0xff]
      %v480 = vld [vmem:[%s5 + $0x28] sm:$0xff]
      %v481 = vld [vmem:[%s5 + $0x30] sm:$0xff]
      %v482 = vld [vmem:[%s5 + $0x38] sm:$0xff]
      %v483 = vld [vmem:[%s5 + $0x40] sm:$0xff]
      %v484 = vld [vmem:[%s5 + $0x48] sm:$0xff]
      %v485 = vld [vmem:[%s5 + $0x50] sm:$0xff]
      %v486 = vld [vmem:[%s5 + $0x58] sm:$0xff]
      %v487 = vld [vmem:[%s5 + $0x60] sm:$0xff]
      %v488 = vld [vmem:[%s5 + $0x68] sm:$0xff]
      %v489 = vld [vmem:[%s5 + $0x70] sm:$0xff]
      %v490 = vld [vmem:[%s5 + $0x78] sm:$0xff]
      %v491 = vld [vmem:[%s5 + $0x80] sm:$0xff]
      %v492 = vld [vmem:[%s5 + $0x88] sm:$0xff]
      %v493 = vld [vmem:[%s5 + $0x90] sm:$0xff]
      %v494 = vld [vmem:[%s5 + $0x98] sm:$0xff]
      %v495 = vld [vmem:[%s5 + $0xa0] sm:$0xff]
      %v496 = vld [vmem:[%s5 + $0xa8] sm:$0xff]
      %v497 = vld [vmem:[%s5 + $0xb0] sm:$0xff]
      %v498 = vld [vmem:[%s5 + $0xb8] sm:$0xff]
      %v499 = vld [vmem:[%s5 + $0xc0] sm:$0xff]
      %v500 = vld [vmem:[%s5 + $0xc8] sm:$0xff]
      %v501 = vld [vmem:[%s5 + $0xd0] sm:$0xff]
      %v502 = vld [vmem:[%s5 + $0xd8] sm:$0xff]
      %v503 = vld [vmem:[%s5 + $0xe0] sm:$0xff]
      %v504 = vld [vmem:[%s5 + $0xe8] sm:$0xff]
      %v505 = vld [vmem:[%s5 + $0xf0] sm:$0xff]
      %v506 = vld [vmem:[%s5 + $0xf8] sm:$0xff]
      %v507 = vld [vmem:[%s5 + $0x100] sm:$0xff]
      %v508 = vld [vmem:[%s5 + $0x108] sm:$0xff]
      %v509 = vld [vmem:[%s5 + $0x110] sm:$0xff]
      %v510 = vld [vmem:[%s5 + $0x118] sm:$0xff]
      %529 = vrot.lane.b32.xlu0 %v405, 96
      %v530 = vpop.permute.xlu0 %529
      %531 = vrot.lane.b32.xlu0 %v408, 96
      %v532 = vpop.permute.xlu0 %531
      %533 = vrot.lane.b32.xlu0 %v413, 96
      %v534 = vpop.permute.xlu0 %533
      %535 = vrot.lane.b32.xlu0 %v416, 96
      %v536 = vpop.permute.xlu0 %535
      %537 = vrot.lane.b32.xlu0 %v421, 96
      %v538 = vpop.permute.xlu0 %537
      %539 = vrot.lane.b32.xlu0 %v424, 96
      %v540 = vpop.permute.xlu0 %539
      %541 = vrot.lane.b32.xlu0 %v429, 96
      %v542 = vpop.permute.xlu0 %541
      %543 = vrot.lane.b32.xlu0 %v432, 96
      %v544 = vpop.permute.xlu0 %543
      %545 = vrot.lane.b32.xlu0 %v437, 96
      %v546 = vpop.permute.xlu0 %545
      %547 = vrot.lane.b32.xlu0 %v440, 96
      %v548 = vpop.permute.xlu0 %547
      %549 = vrot.lane.b32.xlu0 %v445, 96
      %v550 = vpop.permute.xlu0 %549
      %551 = vrot.lane.b32.xlu0 %v448, 96
      %v552 = vpop.permute.xlu0 %551
      %553 = vrot.lane.b32.xlu0 %v453, 96
      %v554 = vpop.permute.xlu0 %553
      %555 = vrot.lane.b32.xlu0 %v456, 96
      %v556 = vpop.permute.xlu0 %555
      %557 = vrot.lane.b32.xlu0 %v461, 96
      %v558 = vpop.permute.xlu0 %557
      %559 = vrot.lane.b32.xlu0 %v464, 96
      %v560 = vpop.permute.xlu0 %559
      %561 = vrot.lane.b32.xlu0 %v469, 96
      %v562 = vpop.permute.xlu0 %561
      %563 = vrot.lane.b32.xlu0 %v472, 96
      %v564 = vpop.permute.xlu0 %563
      %vm565 = vcmask 130048
      %v566 = vsel %vm565, %v405, 0
      %v568 = vsel %vm565, %v408, 0
      %v570 = vsel %vm565, %v413, 0
      %v572 = vsel %vm565, %v416, 0
      %v574 = vsel %vm565, %v421, 0
      %v576 = vsel %vm565, %v424, 0
      %v578 = vsel %vm565, %v429, 0
      %v580 = vsel %vm565, %v432, 0
      %v582 = vsel %vm565, %v437, 0
      %v584 = vsel %vm565, %v440, 0
      %v586 = vsel %vm565, %v445, 0
      %v588 = vsel %vm565, %v448, 0
      %v590 = vsel %vm565, %v453, 0
      %v592 = vsel %vm565, %v456, 0
      %v594 = vsel %vm565, %v461, 0
      %v596 = vsel %vm565, %v464, 0
      %v598 = vsel %vm565, %v469, 0
      %v600 = vsel %vm565, %v472, 0
      %v602 = vsel %vm565, %v530, 0
      %v604 = vsel %vm565, %v532, 0
      %v606 = vsel %vm565, %v534, 0
      %v608 = vsel %vm565, %v536, 0
      %v610 = vsel %vm565, %v538, 0
      %v612 = vsel %vm565, %v540, 0
      %v614 = vsel %vm565, %v542, 0
      %v616 = vsel %vm565, %v544, 0
      %v618 = vsel %vm565, %v546, 0
      %v620 = vsel %vm565, %v548, 0
      %v622 = vsel %vm565, %v550, 0
      %v624 = vsel %vm565, %v552, 0
      %v626 = vsel %vm565, %v554, 0
      %v628 = vsel %vm565, %v556, 0
      %v630 = vsel %vm565, %v558, 0
      %v632 = vsel %vm565, %v560, 0
      %v634 = vsel %vm565, %v562, 0
      %v636 = vsel %vm565, %v564, 0
      %638 = vmatprep.subr.mxu0 0.0
      %639 = vmatpush1.xpose.msra.mxu0 %v602
      %640 = vmatprep.subr.mxu0 0.0
      %641 = vmatpush1.xpose.msra.mxu0 %v604
      %642 = vmatprep.subr.mxu0 0.0
      %643 = vmatpush1.xpose.msra.mxu0 %v606
      %644 = vmatprep.subr.mxu0 0.0
      %645 = vmatpush1.xpose.msra.mxu0 %v608
      %646 = vmatprep.subr.mxu0 0.0
      %647 = vmatpush1.xpose.msra.mxu0 %v610
      %648 = vmatprep.subr.mxu0 0.0
      %649 = vmatpush1.xpose.msra.mxu0 %v612
      %650 = vmatprep.subr.mxu0 0.0
      %651 = vmatpush1.xpose.msra.mxu0 %v614
      %652 = vmatprep.subr.mxu0 0.0
      %653 = vmatpush1.xpose.msra.mxu0 %v616
      %654 = vmatprep.subr.mxu0 0.0
      %655 = vmatpush1.xpose.msra.mxu0 %v618
      %656 = vmatprep.subr.mxu0 0.0
      %657 = vmatpush1.xpose.msra.mxu0 %v620
      %658 = vmatprep.subr.mxu0 0.0
      %659 = vmatpush1.xpose.msra.mxu0 %v622
      %660 = vmatprep.subr.mxu0 0.0
      %661 = vmatpush1.xpose.msra.mxu0 %v624
      %662 = vmatprep.subr.mxu0 0.0
      %663 = vmatpush1.xpose.msra.mxu0 %v626
      %664 = vmatprep.subr.mxu0 0.0
      %665 = vmatpush1.xpose.msra.mxu0 %v628
      %666 = vmatprep.subr.mxu0 0.0
      %667 = vmatpush1.xpose.msra.mxu0 %v630
      %668 = vmatprep.subr.mxu0 0.0
      %669 = vmatpush1.xpose.msra.mxu0 %v632
      %670 = vmatprep.subr.mxu0 0.0
      %671 = vmatpush1.xpose.msra.mxu0 %v634
      %672 = vmatprep.subr.mxu0 0.0
      %673 = vmatpush1.xpose.msra.mxu0 %v636
      %674 = vmatprep.subr.mxu0 0.0
      %675 = vmatpush1.xpose.msra.mxu0 0.0
      %676 = vmatprep.subr.mxu0 0.0
      %677 = vmatpush1.xpose.msra.mxu0 0.0
      %678 = vmatprep.subr.mxu0 0.0
      %679 = vmatpush1.xpose.msra.mxu0 0.0
      %680 = vmatprep.subr.mxu0 0.0
      %681 = vmatpush1.xpose.msra.mxu0 0.0
      %682 = vmatprep.subr.mxu0 0.0
      %683 = vmatpush1.xpose.msra.mxu0 0.0
      %684 = vmatprep.subr.mxu0 0.0
      %685 = vmatpush1.xpose.msra.mxu0 0.0
      %686 = vmatprep.subr.mxu0 0.0
      %687 = vmatpush1.xpose.msra.mxu0 0.0
      %688 = vmatprep.subr.mxu0 0.0
      %689 = vmatpush1.xpose.msra.mxu0 0.0
      %690 = vmatprep.subr.mxu0 0.0
      %691 = vmatpush1.xpose.msra.mxu0 0.0
      %692 = vmatprep.subr.mxu0 0.0
      %693 = vmatpush1.xpose.msra.mxu0 0.0
      %694 = vmatprep.subr.mxu0 0.0
      %695 = vmatpush1.xpose.msra.mxu0 0.0
      %696 = vmatprep.subr.mxu0 0.0
      %697 = vmatpush1.xpose.msra.mxu0 0.0
      %698 = vmatprep.subr.mxu0 0.0
      %699 = vmatpush1.xpose.msra.mxu0 0.0
      %700 = vmatprep.subr.mxu0 0.0
      %701 = vmatpush1.xpose.msra.mxu0 0.0
      %702 = vmatprep.mubr.f32.mxu0 0.0
      %703 = vmatmul.mubr.f32.gmra.mrb[0].mxu0 %v566
      %v704 = vpop.f32.mrb[0].mxu0
      %v705 = vadd.f32 %v475, %v704
      %v706 = vpop.f32.mrb[0].mxu0
      %v707 = vadd.f32 %v476, %v706
      %708 = vmatprep.mubr.f32.mxu0 0.0
      %709 = vmatmul.mubr.f32.gmra.mrb[0].mxu0 %v568
      %v710 = vpop.f32.mrb[0].mxu0
      %v711 = vadd.f32 %v477, %v710
      %v712 = vpop.f32.mrb[0].mxu0
      %v713 = vadd.f32 %v478, %v712
      %714 = vmatprep.mubr.f32.mxu0 0.0
      %715 = vmatmul.mubr.f32.gmra.mrb[0].mxu0 %v570
      %v716 = vpop.f32.mrb[0].mxu0
      %v717 = vadd.f32 %v479, %v716
      %v718 = vpop.f32.mrb[0].mxu0
      %v719 = vadd.f32 %v480, %v718
      %720 = vmatprep.mubr.f32.mxu0 0.0
      %721 = vmatmul.mubr.f32.gmra.mrb[0].mxu0 %v572
      %v722 = vpop.f32.mrb[0].mxu0
      %v723 = vadd.f32 %v481, %v722
      %v724 = vpop.f32.mrb[0].mxu0
      %v725 = vadd.f32 %v482, %v724
      %726 = vmatprep.mubr.f32.mxu0 0.0
      %727 = vmatmul.mubr.f32.gmra.mrb[0].mxu0 %v574
      %v728 = vpop.f32.mrb[0].mxu0
      %v729 = vadd.f32 %v483, %v728
      %v730 = vpop.f32.mrb[0].mxu0
      %v731 = vadd.f32 %v484, %v730
      %732 = vmatprep.mubr.f32.mxu0 0.0
      %733 = vmatmul.mubr.f32.gmra.mrb[0].mxu0 %v576
      %v734 = vpop.f32.mrb[0].mxu0
      %v735 = vadd.f32 %v485, %v734
      %v736 = vpop.f32.mrb[0].mxu0
      %v737 = vadd.f32 %v486, %v736
      %738 = vmatprep.mubr.f32.mxu0 0.0
      %739 = vmatmul.mubr.f32.gmra.mrb[0].mxu0 %v578
      %v740 = vpop.f32.mrb[0].mxu0
      %v741 = vadd.f32 %v487, %v740
      %v742 = vpop.f32.mrb[0].mxu0
      %v743 = vadd.f32 %v488, %v742
      %744 = vmatprep.mubr.f32.mxu0 0.0
      %745 = vmatmul.mubr.f32.gmra.mrb[0].mxu0 %v580
      %v746 = vpop.f32.mrb[0].mxu0
      %v747 = vadd.f32 %v489, %v746
      %v748 = vpop.f32.mrb[0].mxu0
      %v749 = vadd.f32 %v490, %v748
      %750 = vmatprep.mubr.f32.mxu0 0.0
      %751 = vmatmul.mubr.f32.gmra.mrb[0].mxu0 %v582
      %v752 = vpop.f32.mrb[0].mxu0
      %v753 = vadd.f32 %v491, %v752
      %v754 = vpop.f32.mrb[0].mxu0
      %v755 = vadd.f32 %v492, %v754
      %756 = vmatprep.mubr.f32.mxu0 0.0
      %757 = vmatmul.mubr.f32.gmra.mrb[0].mxu0 %v584
      %v758 = vpop.f32.mrb[0].mxu0
      %v759 = vadd.f32 %v493, %v758
      %v760 = vpop.f32.mrb[0].mxu0
      %v761 = vadd.f32 %v494, %v760
      %762 = vmatprep.mubr.f32.mxu0 0.0
      %763 = vmatmul.mubr.f32.gmra.mrb[0].mxu0 %v586
      %v764 = vpop.f32.mrb[0].mxu0
      %v765 = vadd.f32 %v495, %v764
      %v766 = vpop.f32.mrb[0].mxu0
      %v767 = vadd.f32 %v496, %v766
      %768 = vmatprep.mubr.f32.mxu0 0.0
      %769 = vmatmul.mubr.f32.gmra.mrb[0].mxu0 %v588
      %v770 = vpop.f32.mrb[0].mxu0
      %v771 = vadd.f32 %v497, %v770
      %v772 = vpop.f32.mrb[0].mxu0
      %v773 = vadd.f32 %v498, %v772
      %774 = vmatprep.mubr.f32.mxu0 0.0
      %775 = vmatmul.mubr.f32.gmra.mrb[0].mxu0 %v590
      %v776 = vpop.f32.mrb[0].mxu0
      %v777 = vadd.f32 %v499, %v776
      %v778 = vpop.f32.mrb[0].mxu0
      %v779 = vadd.f32 %v500, %v778
      %780 = vmatprep.mubr.f32.mxu0 0.0
      %781 = vmatmul.mubr.f32.gmra.mrb[0].mxu0 %v592
      %v782 = vpop.f32.mrb[0].mxu0
      %v783 = vadd.f32 %v501, %v782
      %v784 = vpop.f32.mrb[0].mxu0
      %v785 = vadd.f32 %v502, %v784
      %786 = vmatprep.mubr.f32.mxu0 0.0
      %787 = vmatmul.mubr.f32.gmra.mrb[0].mxu0 %v594
      %v788 = vpop.f32.mrb[0].mxu0
      %v789 = vadd.f32 %v503, %v788
      %v790 = vpop.f32.mrb[0].mxu0
      %v791 = vadd.f32 %v504, %v790
      %792 = vmatprep.mubr.f32.mxu0 0.0
      %793 = vmatmul.mubr.f32.gmra.mrb[0].mxu0 %v596
      %v794 = vpop.f32.mrb[0].mxu0
      %v795 = vadd.f32 %v505, %v794
      %v796 = vpop.f32.mrb[0].mxu0
      %v797 = vadd.f32 %v506, %v796
      %798 = vmatprep.mubr.f32.mxu0 0.0
      %799 = vmatmul.mubr.f32.gmra.mrb[0].mxu0 %v598
      %v800 = vpop.f32.mrb[0].mxu0
      %v801 = vadd.f32 %v507, %v800
      %v802 = vpop.f32.mrb[0].mxu0
      %v803 = vadd.f32 %v508, %v802
      %804 = vmatprep.mubr.f32.mxu0 0.0
      %805 = vmatmul.mubr.f32.gmra.mrb[0].mxu0 %v600
      %v806 = vpop.f32.mrb[0].mxu0
      %v807 = vadd.f32 %v509, %v806
      %v808 = vpop.f32.mrb[0].mxu0
      %v809 = vadd.f32 %v510, %v808
      %810 = vdwg.mxu0
      %v811 = vsel %vm565, %v707, -inf
      %v812 = vmax.f32 %v705, %v811
      %813 = vmax.xlane.f32.xlu0 %v812
      %v814 = vpop.xlane.xlu0 %813
      %v815 = vsel %vm565, %v713, -inf
      %v816 = vmax.f32 %v711, %v815
      %817 = vmax.xlane.f32.xlu0 %v816
      %v818 = vpop.xlane.xlu0 %817
      %v819 = vsel %vm565, %v719, -inf
      %v820 = vmax.f32 %v717, %v819
      %821 = vmax.xlane.f32.xlu0 %v820
      %v822 = vpop.xlane.xlu0 %821
      %v823 = vsel %vm565, %v725, -inf
      %v824 = vmax.f32 %v723, %v823
      %825 = vmax.xlane.f32.xlu0 %v824
      %v826 = vpop.xlane.xlu0 %825
      %v827 = vsel %vm565, %v731, -inf
      %v828 = vmax.f32 %v729, %v827
      %829 = vmax.xlane.f32.xlu0 %v828
      %v830 = vpop.xlane.xlu0 %829
      %v831 = vsel %vm565, %v737, -inf
      %v832 = vmax.f32 %v735, %v831
      %833 = vmax.xlane.f32.xlu0 %v832
      %v834 = vpop.xlane.xlu0 %833
      %v835 = vsel %vm565, %v743, -inf
      %v836 = vmax.f32 %v741, %v835
      %837 = vmax.xlane.f32.xlu0 %v836
      %v838 = vpop.xlane.xlu0 %837
      %v839 = vsel %vm565, %v749, -inf
      %v840 = vmax.f32 %v747, %v839
      %841 = vmax.xlane.f32.xlu0 %v840
      %v842 = vpop.xlane.xlu0 %841
      %v843 = vsel %vm565, %v755, -inf
      %v844 = vmax.f32 %v753, %v843
      %845 = vmax.xlane.f32.xlu0 %v844
      %v846 = vpop.xlane.xlu0 %845
      %v847 = vsel %vm565, %v761, -inf
      %v848 = vmax.f32 %v759, %v847
      %849 = vmax.xlane.f32.xlu0 %v848
      %v850 = vpop.xlane.xlu0 %849
      %v851 = vsel %vm565, %v767, -inf
      %v852 = vmax.f32 %v765, %v851
      %853 = vmax.xlane.f32.xlu0 %v852
      %v854 = vpop.xlane.xlu0 %853
      %v855 = vsel %vm565, %v773, -inf
      %v856 = vmax.f32 %v771, %v855
      %857 = vmax.xlane.f32.xlu0 %v856
      %v858 = vpop.xlane.xlu0 %857
      %v859 = vsel %vm565, %v779, -inf
      %v860 = vmax.f32 %v777, %v859
      %861 = vmax.xlane.f32.xlu0 %v860
      %v862 = vpop.xlane.xlu0 %861
      %v863 = vsel %vm565, %v785, -inf
      %v864 = vmax.f32 %v783, %v863
      %865 = vmax.xlane.f32.xlu0 %v864
      %v866 = vpop.xlane.xlu0 %865
      %v867 = vsel %vm565, %v791, -inf
      %v868 = vmax.f32 %v789, %v867
      %869 = vmax.xlane.f32.xlu0 %v868
      %v870 = vpop.xlane.xlu0 %869
      %v871 = vsel %vm565, %v797, -inf
      %v872 = vmax.f32 %v795, %v871
      %873 = vmax.xlane.f32.xlu0 %v872
      %v874 = vpop.xlane.xlu0 %873
      %v875 = vsel %vm565, %v803, -inf
      %v876 = vmax.f32 %v801, %v875
      %877 = vmax.xlane.f32.xlu0 %v876
      %v878 = vpop.xlane.xlu0 %877
      %v879 = vsel %vm565, %v809, -inf
      %v880 = vmax.f32 %v807, %v879
      %881 = vmax.xlane.f32.xlu0 %v880
      %v882 = vpop.xlane.xlu0 %881
      %v883 = vsub.f32 %v705, %v814
      %v884 = vsub.f32 %v707, %v814
      %v885 = vsub.f32 %v711, %v818
      %v886 = vsub.f32 %v713, %v818
      %v887 = vsub.f32 %v717, %v822
      %v888 = vsub.f32 %v719, %v822
      %v889 = vsub.f32 %v723, %v826
      %v890 = vsub.f32 %v725, %v826
      %v891 = vsub.f32 %v729, %v830
      %v892 = vsub.f32 %v731, %v830
      %v893 = vsub.f32 %v735, %v834
      %v894 = vsub.f32 %v737, %v834
      %v895 = vsub.f32 %v741, %v838
      %v896 = vsub.f32 %v743, %v838
      %v897 = vsub.f32 %v747, %v842
      %v898 = vsub.f32 %v749, %v842
      %v899 = vsub.f32 %v753, %v846
      %v900 = vsub.f32 %v755, %v846
      %v901 = vsub.f32 %v759, %v850
      %v902 = vsub.f32 %v761, %v850
      %v903 = vsub.f32 %v765, %v854
      %v904 = vsub.f32 %v767, %v854
      %v905 = vsub.f32 %v771, %v858
      %v906 = vsub.f32 %v773, %v858
      %v907 = vsub.f32 %v777, %v862
      %v908 = vsub.f32 %v779, %v862
      %v909 = vsub.f32 %v783, %v866
      %v910 = vsub.f32 %v785, %v866
      %v911 = vsub.f32 %v789, %v870
      %v912 = vsub.f32 %v791, %v870
      %v913 = vsub.f32 %v795, %v874
      %v914 = vsub.f32 %v797, %v874
      %v915 = vsub.f32 %v801, %v878
      %v916 = vsub.f32 %v803, %v878
      %v917 = vsub.f32 %v807, %v882
      %v918 = vsub.f32 %v809, %v882
      %v919 = vmul.f32 %v883, 1.442695
      %v920 = vpow.pop %v919
      %v921 = vmul.f32 %v884, 1.442695
      %v922 = vpow.pop %v921
      %v923 = vmul.f32 %v885, 1.442695
      %v924 = vpow.pop %v923
      %v925 = vmul.f32 %v886, 1.442695
      %v926 = vpow.pop %v925
      %v927 = vmul.f32 %v887, 1.442695
      %v928 = vpow.pop %v927
      %v929 = vmul.f32 %v888, 1.442695
      %v930 = vpow.pop %v929
      %v931 = vmul.f32 %v889, 1.442695
      %v932 = vpow.pop %v931
      %v933 = vmul.f32 %v890, 1.442695
      %v934 = vpow.pop %v933
      %v935 = vmul.f32 %v891, 1.442695
      %v936 = vpow.pop %v935
      %v937 = vmul.f32 %v892, 1.442695
      %v938 = vpow.pop %v937
      %v939 = vmul.f32 %v893, 1.442695
      %v940 = vpow.pop %v939
      %v941 = vmul.f32 %v894, 1.442695
      %v942 = vpow.pop %v941
      %v943 = vmul.f32 %v895, 1.442695
      %v944 = vpow.pop %v943
      %v945 = vmul.f32 %v896, 1.442695
      %v946 = vpow.pop %v945
      %v947 = vmul.f32 %v897, 1.442695
      %v948 = vpow.pop %v947
      %v949 = vmul.f32 %v898, 1.442695
      %v950 = vpow.pop %v949
      %v951 = vmul.f32 %v899, 1.442695
      %v952 = vpow.pop %v951
      %v953 = vmul.f32 %v900, 1.442695
      %v954 = vpow.pop %v953
      %v955 = vmul.f32 %v901, 1.442695
      %v956 = vpow.pop %v955
      %v957 = vmul.f32 %v902, 1.442695
      %v958 = vpow.pop %v957
      %v959 = vmul.f32 %v903, 1.442695
      %v960 = vpow.pop %v959
      %v961 = vmul.f32 %v904, 1.442695
      %v962 = vpow.pop %v961
      %v963 = vmul.f32 %v905, 1.442695
      %v964 = vpow.pop %v963
      %v965 = vmul.f32 %v906, 1.442695
      %v966 = vpow.pop %v965
      %v967 = vmul.f32 %v907, 1.442695
      %v968 = vpow.pop %v967
      %v969 = vmul.f32 %v908, 1.442695
      %v970 = vpow.pop %v969
      %v971 = vmul.f32 %v909, 1.442695
      %v972 = vpow.pop %v971
      %v973 = vmul.f32 %v910, 1.442695
      %v974 = vpow.pop %v973
      %v975 = vmul.f32 %v911, 1.442695
      %v976 = vpow.pop %v975
      %v977 = vmul.f32 %v912, 1.442695
      %v978 = vpow.pop %v977
      %v979 = vmul.f32 %v913, 1.442695
      %v980 = vpow.pop %v979
      %v981 = vmul.f32 %v914, 1.442695
      %v982 = vpow.pop %v981
      %v983 = vmul.f32 %v915, 1.442695
      %v984 = vpow.pop %v983
      %v985 = vmul.f32 %v916, 1.442695
      %v986 = vpow.pop %v985
      %v987 = vmul.f32 %v917, 1.442695
      %v988 = vpow.pop %v987
      %v989 = vmul.f32 %v918, 1.442695
      %v990 = vpow.pop %v989
      %v991 = vsel %vm565, %v922, 0.0
      %v992 = vadd.f32 %v920, %v991
      %993 = vadd.xlane.f32.xlu0 %v992
      %v994 = vpop.xlane.xlu0 %993
      %v995 = vsel %vm565, %v926, 0.0
      %v996 = vadd.f32 %v924, %v995
      %997 = vadd.xlane.f32.xlu0 %v996
      %v998 = vpop.xlane.xlu0 %997
      %v999 = vsel %vm565, %v930, 0.0
      %v1000 = vadd.f32 %v928, %v999
      %1001 = vadd.xlane.f32.xlu0 %v1000
      %v1002 = vpop.xlane.xlu0 %1001
      %v1003 = vsel %vm565, %v934, 0.0
      %v1004 = vadd.f32 %v932, %v1003
      %1005 = vadd.xlane.f32.xlu0 %v1004
      %v1006 = vpop.xlane.xlu0 %1005
      %v1007 = vsel %vm565, %v938, 0.0
      %v1008 = vadd.f32 %v936, %v1007
      %1009 = vadd.xlane.f32.xlu0 %v1008
      %v1010 = vpop.xlane.xlu0 %1009
      %v1011 = vsel %vm565, %v942, 0.0
      %v1012 = vadd.f32 %v940, %v1011
      %1013 = vadd.xlane.f32.xlu0 %v1012
      %v1014 = vpop.xlane.xlu0 %1013
      %v1015 = vsel %vm565, %v946, 0.0
      %v1016 = vadd.f32 %v944, %v1015
      %1017 = vadd.xlane.f32.xlu0 %v1016
      %v1018 = vpop.xlane.xlu0 %1017
      %v1019 = vsel %vm565, %v950, 0.0
      %v1020 = vadd.f32 %v948, %v1019
      %1021 = vadd.xlane.f32.xlu0 %v1020
      %v1022 = vpop.xlane.xlu0 %1021
      %v1023 = vsel %vm565, %v954, 0.0
      %v1024 = vadd.f32 %v952, %v1023
      %1025 = vadd.xlane.f32.xlu0 %v1024
      %v1026 = vpop.xlane.xlu0 %1025
      %v1027 = vsel %vm565, %v958, 0.0
      %v1028 = vadd.f32 %v956, %v1027
      %1029 = vadd.xlane.f32.xlu0 %v1028
      %v1030 = vpop.xlane.xlu0 %1029
      %v1031 = vsel %vm565, %v962, 0.0
      %v1032 = vadd.f32 %v960, %v1031
      %1033 = vadd.xlane.f32.xlu0 %v1032
      %v1034 = vpop.xlane.xlu0 %1033
      %v1035 = vsel %vm565, %v966, 0.0
      %v1036 = vadd.f32 %v964, %v1035
      %1037 = vadd.xlane.f32.xlu0 %v1036
      %v1038 = vpop.xlane.xlu0 %1037
      %v1039 = vsel %vm565, %v970, 0.0
      %v1040 = vadd.f32 %v968, %v1039
      %1041 = vadd.xlane.f32.xlu0 %v1040
      %v1042 = vpop.xlane.xlu0 %1041
      %v1043 = vsel %vm565, %v974, 0.0
      %v1044 = vadd.f32 %v972, %v1043
      %1045 = vadd.xlane.f32.xlu0 %v1044
      %v1046 = vpop.xlane.xlu0 %1045
      %v1047 = vsel %vm565, %v978, 0.0
      %v1048 = vadd.f32 %v976, %v1047
      %1049 = vadd.xlane.f32.xlu0 %v1048
      %v1050 = vpop.xlane.xlu0 %1049
      %v1051 = vsel %vm565, %v982, 0.0
      %v1052 = vadd.f32 %v980, %v1051
      %1053 = vadd.xlane.f32.xlu0 %v1052
      %v1054 = vpop.xlane.xlu0 %1053
      %v1055 = vsel %vm565, %v986, 0.0
      %v1056 = vadd.f32 %v984, %v1055
      %1057 = vadd.xlane.f32.xlu0 %v1056
      %v1058 = vpop.xlane.xlu0 %1057
      %v1059 = vsel %vm565, %v990, 0.0
      %v1060 = vadd.f32 %v988, %v1059
      %1061 = vadd.xlane.f32.xlu0 %v1060
      %v1062 = vpop.xlane.xlu0 %1061
      %v1063 = vrcp.pop %v994
      %v1064 = vrcp.pop %v998
      %v1065 = vrcp.pop %v1002
      %v1066 = vrcp.pop %v1006
      %v1067 = vrcp.pop %v1010
      %v1068 = vrcp.pop %v1014
      %v1069 = vrcp.pop %v1018
      %v1070 = vrcp.pop %v1022
      %v1071 = vrcp.pop %v1026
      %v1072 = vrcp.pop %v1030
      %v1073 = vrcp.pop %v1034
      %v1074 = vrcp.pop %v1038
      %v1075 = vrcp.pop %v1042
      %v1076 = vrcp.pop %v1046
      %v1077 = vrcp.pop %v1050
      %v1078 = vrcp.pop %v1054
      %v1079 = vrcp.pop %v1058
      %v1080 = vrcp.pop %v1062
      %v1081 = vmul.f32 %v920, %v1063
      %v1082 = vmul.f32 %v922, %v1063
      %v1083 = vmul.f32 %v924, %v1064
      %v1084 = vmul.f32 %v926, %v1064
      %v1085 = vmul.f32 %v928, %v1065
      %v1086 = vmul.f32 %v930, %v1065
      %v1087 = vmul.f32 %v932, %v1066
      %v1088 = vmul.f32 %v934, %v1066
      %v1089 = vmul.f32 %v936, %v1067
      %v1090 = vmul.f32 %v938, %v1067
      %v1091 = vmul.f32 %v940, %v1068
      %v1092 = vmul.f32 %v942, %v1068
      %v1093 = vmul.f32 %v944, %v1069
      %v1094 = vmul.f32 %v946, %v1069
      %v1095 = vmul.f32 %v948, %v1070
      %v1096 = vmul.f32 %v950, %v1070
      %v1097 = vmul.f32 %v952, %v1071
      %v1098 = vmul.f32 %v954, %v1071
      %v1099 = vmul.f32 %v956, %v1072
      %v1100 = vmul.f32 %v958, %v1072
      %v1101 = vmul.f32 %v960, %v1073
      %v1102 = vmul.f32 %v962, %v1073
      %v1103 = vmul.f32 %v964, %v1074
      %v1104 = vmul.f32 %v966, %v1074
      %v1105 = vmul.f32 %v968, %v1075
      %v1106 = vmul.f32 %v970, %v1075
      %v1107 = vmul.f32 %v972, %v1076
      %v1108 = vmul.f32 %v974, %v1076
      %v1109 = vmul.f32 %v976, %v1077
      %v1110 = vmul.f32 %v978, %v1077
      %v1111 = vmul.f32 %v980, %v1078
      %v1112 = vmul.f32 %v982, %v1078
      %v1113 = vmul.f32 %v984, %v1079
      %v1114 = vmul.f32 %v986, %v1079
      %v1115 = vmul.f32 %v988, %v1080
      %v1116 = vmul.f32 %v990, %v1080
      %1117 = vrot.lane.b32.xlu0 %v405, 64
      %v1118 = vpop.permute.xlu0 %1117
      %1119 = vrot.lane.b32.xlu0 %v408, 64
      %v1120 = vpop.permute.xlu0 %1119
      %1121 = vrot.lane.b32.xlu0 %v413, 64
      %v1122 = vpop.permute.xlu0 %1121
      %1123 = vrot.lane.b32.xlu0 %v416, 64
      %v1124 = vpop.permute.xlu0 %1123
      %1125 = vrot.lane.b32.xlu0 %v421, 64
      %v1126 = vpop.permute.xlu0 %1125
      %1127 = vrot.lane.b32.xlu0 %v424, 64
      %v1128 = vpop.permute.xlu0 %1127
      %1129 = vrot.lane.b32.xlu0 %v429, 64
      %v1130 = vpop.permute.xlu0 %1129
      %1131 = vrot.lane.b32.xlu0 %v432, 64
      %v1132 = vpop.permute.xlu0 %1131
      %1133 = vrot.lane.b32.xlu0 %v437, 64
      %v1134 = vpop.permute.xlu0 %1133
      %1135 = vrot.lane.b32.xlu0 %v440, 64
      %v1136 = vpop.permute.xlu0 %1135
      %1137 = vrot.lane.b32.xlu0 %v445, 64
      %v1138 = vpop.permute.xlu0 %1137
      %1139 = vrot.lane.b32.xlu0 %v448, 64
      %v1140 = vpop.permute.xlu0 %1139
      %1141 = vrot.lane.b32.xlu0 %v453, 64
      %v1142 = vpop.permute.xlu0 %1141
      %1143 = vrot.lane.b32.xlu0 %v456, 64
      %v1144 = vpop.permute.xlu0 %1143
      %1145 = vrot.lane.b32.xlu0 %v461, 64
      %v1146 = vpop.permute.xlu0 %1145
      %1147 = vrot.lane.b32.xlu0 %v464, 64
      %v1148 = vpop.permute.xlu0 %1147
      %1149 = vrot.lane.b32.xlu0 %v469, 64
      %v1150 = vpop.permute.xlu0 %1149
      %1151 = vrot.lane.b32.xlu0 %v472, 64
      %v1152 = vpop.permute.xlu0 %1151
      %v1172 = vsel %vm565, %v1082, 0
      %v1175 = vsel %vm565, %v1084, 0
      %v1178 = vsel %vm565, %v1086, 0
      %v1181 = vsel %vm565, %v1088, 0
      %v1184 = vsel %vm565, %v1090, 0
      %v1187 = vsel %vm565, %v1092, 0
      %v1190 = vsel %vm565, %v1094, 0
      %v1193 = vsel %vm565, %v1096, 0
      %v1196 = vsel %vm565, %v1098, 0
      %v1199 = vsel %vm565, %v1100, 0
      %v1202 = vsel %vm565, %v1102, 0
      %v1205 = vsel %vm565, %v1104, 0
      %v1208 = vsel %vm565, %v1106, 0
      %v1211 = vsel %vm565, %v1108, 0
      %v1214 = vsel %vm565, %v1110, 0
      %v1217 = vsel %vm565, %v1112, 0
      %v1220 = vsel %vm565, %v1114, 0
      %v1223 = vsel %vm565, %v1116, 0
      %1225 = vmatprep.subr.mxu0 0.0
      %1226 = vmatpush1.msra.mxu0 %v1118
      %1227 = vmatprep.subr.mxu0 0.0
      %1228 = vmatpush1.msra.mxu0 %v1120
      %1229 = vmatprep.subr.mxu0 0.0
      %1230 = vmatpush1.msra.mxu0 %v1122
      %1231 = vmatprep.subr.mxu0 0.0
      %1232 = vmatpush1.msra.mxu0 %v1124
      %1233 = vmatprep.subr.mxu0 0.0
      %1234 = vmatpush1.msra.mxu0 %v1126
      %1235 = vmatprep.subr.mxu0 0.0
      %1236 = vmatpush1.msra.mxu0 %v1128
      %1237 = vmatprep.subr.mxu0 0.0
      %1238 = vmatpush1.msra.mxu0 %v1130
      %1239 = vmatprep.subr.mxu0 0.0
      %1240 = vmatpush1.msra.mxu0 %v1132
      %1241 = vmatprep.subr.mxu0 0.0
      %1242 = vmatpush1.msra.mxu0 %v1134
      %1243 = vmatprep.subr.mxu0 0.0
      %1244 = vmatpush1.msra.mxu0 %v1136
      %1245 = vmatprep.subr.mxu0 0.0
      %1246 = vmatpush1.msra.mxu0 %v1138
      %1247 = vmatprep.subr.mxu0 0.0
      %1248 = vmatpush1.msra.mxu0 %v1140
      %1249 = vmatprep.subr.mxu0 0.0
      %1250 = vmatpush1.msra.mxu0 %v1142
      %1251 = vmatprep.subr.mxu0 0.0
      %1252 = vmatpush1.msra.mxu0 %v1144
      %1253 = vmatprep.subr.mxu0 0.0
      %1254 = vmatpush1.msra.mxu0 %v1146
      %1255 = vmatprep.subr.mxu0 0.0
      %1256 = vmatpush1.msra.mxu0 %v1148
      %1257 = vmatprep.subr.mxu0 0.0
      %1258 = vmatpush1.msra.mxu0 %v1150
      %1259 = vmatprep.subr.mxu0 0.0
      %1260 = vmatpush1.msra.mxu0 %v1152
      %1261 = vmatprep.subr.mxu0 0.0
      %1262 = vmatpush1.msra.mxu0 0.0
      %1263 = vmatprep.subr.mxu0 0.0
      %1264 = vmatpush1.msra.mxu0 0.0
      %1265 = vmatprep.subr.mxu0 0.0
      %1266 = vmatpush1.msra.mxu0 0.0
      %1267 = vmatprep.subr.mxu0 0.0
      %1268 = vmatpush1.msra.mxu0 0.0
      %1269 = vmatprep.subr.mxu0 0.0
      %1270 = vmatpush1.msra.mxu0 0.0
      %1271 = vmatprep.subr.mxu0 0.0
      %1272 = vmatpush1.msra.mxu0 0.0
      %1273 = vmatprep.subr.mxu0 0.0
      %1274 = vmatpush1.msra.mxu0 0.0
      %1275 = vmatprep.subr.mxu0 0.0
      %1276 = vmatpush1.msra.mxu0 0.0
      %1277 = vmatprep.subr.mxu0 0.0
      %1278 = vmatpush1.msra.mxu0 0.0
      %1279 = vmatprep.subr.mxu0 0.0
      %1280 = vmatpush1.msra.mxu0 0.0
      %1281 = vmatprep.subr.mxu0 0.0
      %1282 = vmatpush1.msra.mxu0 0.0
      %1283 = vmatprep.subr.mxu0 0.0
      %1284 = vmatpush1.msra.mxu0 0.0
      %1285 = vmatprep.subr.mxu0 0.0
      %1286 = vmatpush1.msra.mxu0 0.0
      %1287 = vmatprep.subr.mxu0 0.0
      %1288 = vmatpush1.msra.mxu0 0.0
      %1289 = vmatprep.mubr.f32.mxu0 %v1172
      %1290 = vmatmul.mubr.f32.gmra.mrb[0].mxu0 %v1081
      %v1291 = vpop.f32.mrb[0].mxu0
      %v1292 = vadd.f32 0.0, %v1291
      %v1293 = vpop.f32.mrb[0].mxu0
      %1294 = vmatprep.mubr.f32.mxu0 %v1175
      %1295 = vmatmul.mubr.f32.gmra.mrb[0].mxu0 %v1083
      %v1296 = vpop.f32.mrb[0].mxu0
      %v1297 = vadd.f32 0.0, %v1296
      %v1298 = vpop.f32.mrb[0].mxu0
      %1299 = vmatprep.mubr.f32.mxu0 %v1178
      %1300 = vmatmul.mubr.f32.gmra.mrb[0].mxu0 %v1085
      %v1301 = vpop.f32.mrb[0].mxu0
      %v1302 = vadd.f32 0.0, %v1301
      %v1303 = vpop.f32.mrb[0].mxu0
      %1304 = vmatprep.mubr.f32.mxu0 %v1181
      %1305 = vmatmul.mubr.f32.gmra.mrb[0].mxu0 %v1087
      %v1306 = vpop.f32.mrb[0].mxu0
      %v1307 = vadd.f32 0.0, %v1306
      %v1308 = vpop.f32.mrb[0].mxu0
      %1309 = vmatprep.mubr.f32.mxu0 %v1184
      %1310 = vmatmul.mubr.f32.gmra.mrb[0].mxu0 %v1089
      %v1311 = vpop.f32.mrb[0].mxu0
      %v1312 = vadd.f32 0.0, %v1311
      %v1313 = vpop.f32.mrb[0].mxu0
      %1314 = vmatprep.mubr.f32.mxu0 %v1187
      %1315 = vmatmul.mubr.f32.gmra.mrb[0].mxu0 %v1091
      %v1316 = vpop.f32.mrb[0].mxu0
      %v1317 = vadd.f32 0.0, %v1316
      %v1318 = vpop.f32.mrb[0].mxu0
      %1319 = vmatprep.mubr.f32.mxu0 %v1190
      %1320 = vmatmul.mubr.f32.gmra.mrb[0].mxu0 %v1093
      %v1321 = vpop.f32.mrb[0].mxu0
      %v1322 = vadd.f32 0.0, %v1321
      %v1323 = vpop.f32.mrb[0].mxu0
      %1324 = vmatprep.mubr.f32.mxu0 %v1193
      %1325 = vmatmul.mubr.f32.gmra.mrb[0].mxu0 %v1095
      %v1326 = vpop.f32.mrb[0].mxu0
      %v1327 = vadd.f32 0.0, %v1326
      %v1328 = vpop.f32.mrb[0].mxu0
      %1329 = vmatprep.mubr.f32.mxu0 %v1196
      %1330 = vmatmul.mubr.f32.gmra.mrb[0].mxu0 %v1097
      %v1331 = vpop.f32.mrb[0].mxu0
      %v1332 = vadd.f32 0.0, %v1331
      %v1333 = vpop.f32.mrb[0].mxu0
      %1334 = vmatprep.mubr.f32.mxu0 %v1199
      %1335 = vmatmul.mubr.f32.gmra.mrb[0].mxu0 %v1099
      %v1336 = vpop.f32.mrb[0].mxu0
      %v1337 = vadd.f32 0.0, %v1336
      %v1338 = vpop.f32.mrb[0].mxu0
      %1339 = vmatprep.mubr.f32.mxu0 %v1202
      %1340 = vmatmul.mubr.f32.gmra.mrb[0].mxu0 %v1101
      %v1341 = vpop.f32.mrb[0].mxu0
      %v1342 = vadd.f32 0.0, %v1341
      %v1343 = vpop.f32.mrb[0].mxu0
      %1344 = vmatprep.mubr.f32.mxu0 %v1205
      %1345 = vmatmul.mubr.f32.gmra.mrb[0].mxu0 %v1103
      %v1346 = vpop.f32.mrb[0].mxu0
      %v1347 = vadd.f32 0.0, %v1346
      %v1348 = vpop.f32.mrb[0].mxu0
      %1349 = vmatprep.mubr.f32.mxu0 %v1208
      %1350 = vmatmul.mubr.f32.gmra.mrb[0].mxu0 %v1105
      %v1351 = vpop.f32.mrb[0].mxu0
      %v1352 = vadd.f32 0.0, %v1351
      %v1353 = vpop.f32.mrb[0].mxu0
      %1354 = vmatprep.mubr.f32.mxu0 %v1211
      %1355 = vmatmul.mubr.f32.gmra.mrb[0].mxu0 %v1107
      %v1356 = vpop.f32.mrb[0].mxu0
      %v1357 = vadd.f32 0.0, %v1356
      %v1358 = vpop.f32.mrb[0].mxu0
      %1359 = vmatprep.mubr.f32.mxu0 %v1214
      %1360 = vmatmul.mubr.f32.gmra.mrb[0].mxu0 %v1109
      %v1361 = vpop.f32.mrb[0].mxu0
      %v1362 = vadd.f32 0.0, %v1361
      %v1363 = vpop.f32.mrb[0].mxu0
      %1364 = vmatprep.mubr.f32.mxu0 %v1217
      %1365 = vmatmul.mubr.f32.gmra.mrb[0].mxu0 %v1111
      %v1366 = vpop.f32.mrb[0].mxu0
      %v1367 = vadd.f32 0.0, %v1366
      %v1368 = vpop.f32.mrb[0].mxu0
      %1369 = vmatprep.mubr.f32.mxu0 %v1220
      %1370 = vmatmul.mubr.f32.gmra.mrb[0].mxu0 %v1113
      %v1371 = vpop.f32.mrb[0].mxu0
      %v1372 = vadd.f32 0.0, %v1371
      %v1373 = vpop.f32.mrb[0].mxu0
      %1374 = vmatprep.mubr.f32.mxu0 %v1223
      %1375 = vmatmul.mubr.f32.gmra.mrb[0].mxu0 %v1115
      %v1376 = vpop.f32.mrb[0].mxu0
      %v1377 = vadd.f32 0.0, %v1376
      %v1378 = vpop.f32.mrb[0].mxu0
      %1379 = vdwg.mxu0
      %v1380 = vld [vmem:[%s3] sm:$0xf]
      %v1381 = vld [vmem:[%s3 + $0x4] sm:$0xf]
      %v1382 = vunpack.c.l.bf16 %v1380
      %v1383 = vunpack.c.l.bf16 %v1381
      %s1384 = scalar_lea.vmem %s5, 288
      %v1385 = vld [vmem:[%s1384] sm:$0xff]
      %v1386 = vld [vmem:[%s1384 + $0x8] sm:$0xff]
      %v1387 = vld [vmem:[%s1384 + $0x10] sm:$0xff]
      %v1388 = vld [vmem:[%s1384 + $0x18] sm:$0xff]
      %v1389 = vld [vmem:[%s1384 + $0x20] sm:$0xff]
      %v1390 = vld [vmem:[%s1384 + $0x28] sm:$0xff]
      %v1391 = vld [vmem:[%s1384 + $0x30] sm:$0xff]
      %v1392 = vld [vmem:[%s1384 + $0x38] sm:$0xff]
      %v1393 = vld [vmem:[%s1384 + $0x40] sm:$0xff]
      %v1394 = vld [vmem:[%s1384 + $0x48] sm:$0xff]
      %v1395 = vld [vmem:[%s1384 + $0x50] sm:$0xff]
      %v1396 = vld [vmem:[%s1384 + $0x58] sm:$0xff]
      %v1397 = vld [vmem:[%s1384 + $0x60] sm:$0xff]
      %v1398 = vld [vmem:[%s1384 + $0x68] sm:$0xff]
      %v1399 = vld [vmem:[%s1384 + $0x70] sm:$0xff]
      %v1400 = vld [vmem:[%s1384 + $0x78] sm:$0xff]
      %v1401 = vld [vmem:[%s1384 + $0x80] sm:$0xff]
      %v1402 = vld [vmem:[%s1384 + $0x88] sm:$0xff]
      %v1403 = vld [vmem:[%s1384 + $0x90] sm:$0xff]
      %v1404 = vld [vmem:[%s1384 + $0x98] sm:$0xff]
      %v1405 = vld [vmem:[%s1384 + $0xa0] sm:$0xff]
      %v1406 = vld [vmem:[%s1384 + $0xa8] sm:$0xff]
      %v1407 = vld [vmem:[%s1384 + $0xb0] sm:$0xff]
      %v1408 = vld [vmem:[%s1384 + $0xb8] sm:$0xff]
      %v1409 = vld [vmem:[%s1384 + $0xc0] sm:$0xff]
      %v1410 = vld [vmem:[%s1384 + $0xc8] sm:$0xff]
      %v1411 = vld [vmem:[%s1384 + $0xd0] sm:$0xff]
      %v1412 = vld [vmem:[%s1384 + $0xd8] sm:$0xff]
      %v1413 = vld [vmem:[%s1384 + $0xe0] sm:$0xff]
      %v1414 = vld [vmem:[%s1384 + $0xe8] sm:$0xff]
      %v1415 = vld [vmem:[%s1384 + $0xf0] sm:$0xff]
      %v1416 = vld [vmem:[%s1384 + $0xf8] sm:$0xff]
      %v1417 = vld [vmem:[%s1384 + $0x100] sm:$0xff]
      %v1418 = vld [vmem:[%s1384 + $0x108] sm:$0xff]
      %v1419 = vld [vmem:[%s1384 + $0x110] sm:$0xff]
      %v1420 = vld [vmem:[%s1384 + $0x118] sm:$0xff]
      %1421 = vrot.lane.b32.xlu0 %v405, 112
      %v1422 = vpop.permute.xlu0 %1421
      %1423 = vrot.lane.b32.xlu0 %v408, 112
      %v1424 = vpop.permute.xlu0 %1423
      %1425 = vrot.lane.b32.xlu0 %v413, 112
      %v1426 = vpop.permute.xlu0 %1425
      %1427 = vrot.lane.b32.xlu0 %v416, 112
      %v1428 = vpop.permute.xlu0 %1427
      %1429 = vrot.lane.b32.xlu0 %v421, 112
      %v1430 = vpop.permute.xlu0 %1429
      %1431 = vrot.lane.b32.xlu0 %v424, 112
      %v1432 = vpop.permute.xlu0 %1431
      %1433 = vrot.lane.b32.xlu0 %v429, 112
      %v1434 = vpop.permute.xlu0 %1433
      %1435 = vrot.lane.b32.xlu0 %v432, 112
      %v1436 = vpop.permute.xlu0 %1435
      %1437 = vrot.lane.b32.xlu0 %v437, 112
      %v1438 = vpop.permute.xlu0 %1437
      %1439 = vrot.lane.b32.xlu0 %v440, 112
      %v1440 = vpop.permute.xlu0 %1439
      %1441 = vrot.lane.b32.xlu0 %v445, 112
      %v1442 = vpop.permute.xlu0 %1441
      %1443 = vrot.lane.b32.xlu0 %v448, 112
      %v1444 = vpop.permute.xlu0 %1443
      %1445 = vrot.lane.b32.xlu0 %v453, 112
      %v1446 = vpop.permute.xlu0 %1445
      %1447 = vrot.lane.b32.xlu0 %v456, 112
      %v1448 = vpop.permute.xlu0 %1447
      %1449 = vrot.lane.b32.xlu0 %v461, 112
      %v1450 = vpop.permute.xlu0 %1449
      %1451 = vrot.lane.b32.xlu0 %v464, 112
      %v1452 = vpop.permute.xlu0 %1451
      %1453 = vrot.lane.b32.xlu0 %v469, 112
      %v1454 = vpop.permute.xlu0 %1453
      %1455 = vrot.lane.b32.xlu0 %v472, 112
      %v1456 = vpop.permute.xlu0 %1455
      %1457 = vrot.lane.b32.xlu0 %v405, 80
      %v1458 = vpop.permute.xlu0 %1457
      %1459 = vrot.lane.b32.xlu0 %v408, 80
      %v1460 = vpop.permute.xlu0 %1459
      %1461 = vrot.lane.b32.xlu0 %v413, 80
      %v1462 = vpop.permute.xlu0 %1461
      %1463 = vrot.lane.b32.xlu0 %v416, 80
      %v1464 = vpop.permute.xlu0 %1463
      %1465 = vrot.lane.b32.xlu0 %v421, 80
      %v1466 = vpop.permute.xlu0 %1465
      %1467 = vrot.lane.b32.xlu0 %v424, 80
      %v1468 = vpop.permute.xlu0 %1467
      %1469 = vrot.lane.b32.xlu0 %v429, 80
      %v1470 = vpop.permute.xlu0 %1469
      %1471 = vrot.lane.b32.xlu0 %v432, 80
      %v1472 = vpop.permute.xlu0 %1471
      %1473 = vrot.lane.b32.xlu0 %v437, 80
      %v1474 = vpop.permute.xlu0 %1473
      %1475 = vrot.lane.b32.xlu0 %v440, 80
      %v1476 = vpop.permute.xlu0 %1475
      %1477 = vrot.lane.b32.xlu0 %v445, 80
      %v1478 = vpop.permute.xlu0 %1477
      %1479 = vrot.lane.b32.xlu0 %v448, 80
      %v1480 = vpop.permute.xlu0 %1479
      %1481 = vrot.lane.b32.xlu0 %v453, 80
      %v1482 = vpop.permute.xlu0 %1481
      %1483 = vrot.lane.b32.xlu0 %v456, 80
      %v1484 = vpop.permute.xlu0 %1483
      %1485 = vrot.lane.b32.xlu0 %v461, 80
      %v1486 = vpop.permute.xlu0 %1485
      %1487 = vrot.lane.b32.xlu0 %v464, 80
      %v1488 = vpop.permute.xlu0 %1487
      %1489 = vrot.lane.b32.xlu0 %v469, 80
      %v1490 = vpop.permute.xlu0 %1489
      %1491 = vrot.lane.b32.xlu0 %v472, 80
      %v1492 = vpop.permute.xlu0 %1491
      %v1493 = vsel %vm565, %v1422, 0
      %v1495 = vsel %vm565, %v1424, 0
      %v1497 = vsel %vm565, %v1426, 0
      %v1499 = vsel %vm565, %v1428, 0
      %v1501 = vsel %vm565, %v1430, 0
      %v1503 = vsel %vm565, %v1432, 0
      %v1505 = vsel %vm565, %v1434, 0
      %v1507 = vsel %vm565, %v1436, 0
      %v1509 = vsel %vm565, %v1438, 0
      %v1511 = vsel %vm565, %v1440, 0
      %v1513 = vsel %vm565, %v1442, 0
      %v1515 = vsel %vm565, %v1444, 0
      %v1517 = vsel %vm565, %v1446, 0
      %v1519 = vsel %vm565, %v1448, 0
      %v1521 = vsel %vm565, %v1450, 0
      %v1523 = vsel %vm565, %v1452, 0
      %v1525 = vsel %vm565, %v1454, 0
      %v1527 = vsel %vm565, %v1456, 0
      %v1529 = vsel %vm565, %v1458, 0
      %v1531 = vsel %vm565, %v1460, 0
      %v1533 = vsel %vm565, %v1462, 0
      %v1535 = vsel %vm565, %v1464, 0
      %v1537 = vsel %vm565, %v1466, 0
      %v1539 = vsel %vm565, %v1468, 0
      %v1541 = vsel %vm565, %v1470, 0
      %v1543 = vsel %vm565, %v1472, 0
      %v1545 = vsel %vm565, %v1474, 0
      %v1547 = vsel %vm565, %v1476, 0
      %v1549 = vsel %vm565, %v1478, 0
      %v1551 = vsel %vm565, %v1480, 0
      %v1553 = vsel %vm565, %v1482, 0
      %v1555 = vsel %vm565, %v1484, 0
      %v1557 = vsel %vm565, %v1486, 0
      %v1559 = vsel %vm565, %v1488, 0
      %v1561 = vsel %vm565, %v1490, 0
      %v1563 = vsel %vm565, %v1492, 0
      %1565 = vmatprep.subr.mxu0 0.0
      %1566 = vmatpush1.xpose.msra.mxu0 %v1529
      %1567 = vmatprep.subr.mxu0 0.0
      %1568 = vmatpush1.xpose.msra.mxu0 %v1531
      %1569 = vmatprep.subr.mxu0 0.0
      %1570 = vmatpush1.xpose.msra.mxu0 %v1533
      %1571 = vmatprep.subr.mxu0 0.0
      %1572 = vmatpush1.xpose.msra.mxu0 %v1535
      %1573 = vmatprep.subr.mxu0 0.0
      %1574 = vmatpush1.xpose.msra.mxu0 %v1537
      %1575 = vmatprep.subr.mxu0 0.0
      %1576 = vmatpush1.xpose.msra.mxu0 %v1539
      %1577 = vmatprep.subr.mxu0 0.0
      %1578 = vmatpush1.xpose.msra.mxu0 %v1541
      %1579 = vmatprep.subr.mxu0 0.0
      %1580 = vmatpush1.xpose.msra.mxu0 %v1543
      %1581 = vmatprep.subr.mxu0 0.0
      %1582 = vmatpush1.xpose.msra.mxu0 %v1545
      %1583 = vmatprep.subr.mxu0 0.0
      %1584 = vmatpush1.xpose.msra.mxu0 %v1547
      %1585 = vmatprep.subr.mxu0 0.0
      %1586 = vmatpush1.xpose.msra.mxu0 %v1549
      %1587 = vmatprep.subr.mxu0 0.0
      %1588 = vmatpush1.xpose.msra.mxu0 %v1551
      %1589 = vmatprep.subr.mxu0 0.0
      %1590 = vmatpush1.xpose.msra.mxu0 %v1553
      %1591 = vmatprep.subr.mxu0 0.0
      %1592 = vmatpush1.xpose.msra.mxu0 %v1555
      %1593 = vmatprep.subr.mxu0 0.0
      %1594 = vmatpush1.xpose.msra.mxu0 %v1557
      %1595 = vmatprep.subr.mxu0 0.0
      %1596 = vmatpush1.xpose.msra.mxu0 %v1559
      %1597 = vmatprep.subr.mxu0 0.0
      %1598 = vmatpush1.xpose.msra.mxu0 %v1561
      %1599 = vmatprep.subr.mxu0 0.0
      %1600 = vmatpush1.xpose.msra.mxu0 %v1563
      %1601 = vmatprep.subr.mxu0 0.0
      %1602 = vmatpush1.xpose.msra.mxu0 0.0
      %1603 = vmatprep.subr.mxu0 0.0
      %1604 = vmatpush1.xpose.msra.mxu0 0.0
      %1605 = vmatprep.subr.mxu0 0.0
      %1606 = vmatpush1.xpose.msra.mxu0 0.0
      %1607 = vmatprep.subr.mxu0 0.0
      %1608 = vmatpush1.xpose.msra.mxu0 0.0
      %1609 = vmatprep.subr.mxu0 0.0
      %1610 = vmatpush1.xpose.msra.mxu0 0.0
      %1611 = vmatprep.subr.mxu0 0.0
      %1612 = vmatpush1.xpose.msra.mxu0 0.0
      %1613 = vmatprep.subr.mxu0 0.0
      %1614 = vmatpush1.xpose.msra.mxu0 0.0
      %1615 = vmatprep.subr.mxu0 0.0
      %1616 = vmatpush1.xpose.msra.mxu0 0.0
      %1617 = vmatprep.subr.mxu0 0.0
      %1618 = vmatpush1.xpose.msra.mxu0 0.0
      %1619 = vmatprep.subr.mxu0 0.0
      %1620 = vmatpush1.xpose.msra.mxu0 0.0
      %1621 = vmatprep.subr.mxu0 0.0
      %1622 = vmatpush1.xpose.msra.mxu0 0.0
      %1623 = vmatprep.subr.mxu0 0.0
      %1624 = vmatpush1.xpose.msra.mxu0 0.0
      %1625 = vmatprep.subr.mxu0 0.0
      %1626 = vmatpush1.xpose.msra.mxu0 0.0
      %1627 = vmatprep.subr.mxu0 0.0
      %1628 = vmatpush1.xpose.msra.mxu0 0.0
      %1629 = vmatprep.mubr.f32.mxu0 0.0
      %1630 = vmatmul.mubr.f32.gmra.mrb[0].mxu0 %v1493
      %v1631 = vpop.f32.mrb[0].mxu0
      %v1632 = vadd.f32 %v1385, %v1631
      %v1633 = vpop.f32.mrb[0].mxu0
      %v1634 = vadd.f32 %v1386, %v1633
      %1635 = vmatprep.mubr.f32.mxu0 0.0
      %1636 = vmatmul.mubr.f32.gmra.mrb[0].mxu0 %v1495
      %v1637 = vpop.f32.mrb[0].mxu0
      %v1638 = vadd.f32 %v1387, %v1637
      %v1639 = vpop.f32.mrb[0].mxu0
      %v1640 = vadd.f32 %v1388, %v1639
      %1641 = vmatprep.mubr.f32.mxu0 0.0
      %1642 = vmatmul.mubr.f32.gmra.mrb[0].mxu0 %v1497
      %v1643 = vpop.f32.mrb[0].mxu0
      %v1644 = vadd.f32 %v1389, %v1643
      %v1645 = vpop.f32.mrb[0].mxu0
      %v1646 = vadd.f32 %v1390, %v1645
      %1647 = vmatprep.mubr.f32.mxu0 0.0
      %1648 = vmatmul.mubr.f32.gmra.mrb[0].mxu0 %v1499
      %v1649 = vpop.f32.mrb[0].mxu0
      %v1650 = vadd.f32 %v1391, %v1649
      %v1651 = vpop.f32.mrb[0].mxu0
      %v1652 = vadd.f32 %v1392, %v1651
      %1653 = vmatprep.mubr.f32.mxu0 0.0
      %1654 = vmatmul.mubr.f32.gmra.mrb[0].mxu0 %v1501
      %v1655 = vpop.f32.mrb[0].mxu0
      %v1656 = vadd.f32 %v1393, %v1655
      %v1657 = vpop.f32.mrb[0].mxu0
      %v1658 = vadd.f32 %v1394, %v1657
      %1659 = vmatprep.mubr.f32.mxu0 0.0
      %1660 = vmatmul.mubr.f32.gmra.mrb[0].mxu0 %v1503
      %v1661 = vpop.f32.mrb[0].mxu0
      %v1662 = vadd.f32 %v1395, %v1661
      %v1663 = vpop.f32.mrb[0].mxu0
      %v1664 = vadd.f32 %v1396, %v1663
      %1665 = vmatprep.mubr.f32.mxu0 0.0
      %1666 = vmatmul.mubr.f32.gmra.mrb[0].mxu0 %v1505
      %v1667 = vpop.f32.mrb[0].mxu0
      %v1668 = vadd.f32 %v1397, %v1667
      %v1669 = vpop.f32.mrb[0].mxu0
      %v1670 = vadd.f32 %v1398, %v1669
      %1671 = vmatprep.mubr.f32.mxu0 0.0
      %1672 = vmatmul.mubr.f32.gmra.mrb[0].mxu0 %v1507
      %v1673 = vpop.f32.mrb[0].mxu0
      %v1674 = vadd.f32 %v1399, %v1673
      %v1675 = vpop.f32.mrb[0].mxu0
      %v1676 = vadd.f32 %v1400, %v1675
      %1677 = vmatprep.mubr.f32.mxu0 0.0
      %1678 = vmatmul.mubr.f32.gmra.mrb[0].mxu0 %v1509
      %v1679 = vpop.f32.mrb[0].mxu0
      %v1680 = vadd.f32 %v1401, %v1679
      %v1681 = vpop.f32.mrb[0].mxu0
      %v1682 = vadd.f32 %v1402, %v1681
      %1683 = vmatprep.mubr.f32.mxu0 0.0
      %1684 = vmatmul.mubr.f32.gmra.mrb[0].mxu0 %v1511
      %v1685 = vpop.f32.mrb[0].mxu0
      %v1686 = vadd.f32 %v1403, %v1685
      %v1687 = vpop.f32.mrb[0].mxu0
      %v1688 = vadd.f32 %v1404, %v1687
      %1689 = vmatprep.mubr.f32.mxu0 0.0
      %1690 = vmatmul.mubr.f32.gmra.mrb[0].mxu0 %v1513
      %v1691 = vpop.f32.mrb[0].mxu0
      %v1692 = vadd.f32 %v1405, %v1691
      %v1693 = vpop.f32.mrb[0].mxu0
      %v1694 = vadd.f32 %v1406, %v1693
      %1695 = vmatprep.mubr.f32.mxu0 0.0
      %1696 = vmatmul.mubr.f32.gmra.mrb[0].mxu0 %v1515
      %v1697 = vpop.f32.mrb[0].mxu0
      %v1698 = vadd.f32 %v1407, %v1697
      %v1699 = vpop.f32.mrb[0].mxu0
      %v1700 = vadd.f32 %v1408, %v1699
      %1701 = vmatprep.mubr.f32.mxu0 0.0
      %1702 = vmatmul.mubr.f32.gmra.mrb[0].mxu0 %v1517
      %v1703 = vpop.f32.mrb[0].mxu0
      %v1704 = vadd.f32 %v1409, %v1703
      %v1705 = vpop.f32.mrb[0].mxu0
      %v1706 = vadd.f32 %v1410, %v1705
      %1707 = vmatprep.mubr.f32.mxu0 0.0
      %1708 = vmatmul.mubr.f32.gmra.mrb[0].mxu0 %v1519
      %v1709 = vpop.f32.mrb[0].mxu0
      %v1710 = vadd.f32 %v1411, %v1709
      %v1711 = vpop.f32.mrb[0].mxu0
      %v1712 = vadd.f32 %v1412, %v1711
      %1713 = vmatprep.mubr.f32.mxu0 0.0
      %1714 = vmatmul.mubr.f32.gmra.mrb[0].mxu0 %v1521
      %v1715 = vpop.f32.mrb[0].mxu0
      %v1716 = vadd.f32 %v1413, %v1715
      %v1717 = vpop.f32.mrb[0].mxu0
      %v1718 = vadd.f32 %v1414, %v1717
      %1719 = vmatprep.mubr.f32.mxu0 0.0
      %1720 = vmatmul.mubr.f32.gmra.mrb[0].mxu0 %v1523
      %v1721 = vpop.f32.mrb[0].mxu0
      %v1722 = vadd.f32 %v1415, %v1721
      %v1723 = vpop.f32.mrb[0].mxu0
      %v1724 = vadd.f32 %v1416, %v1723
      %1725 = vmatprep.mubr.f32.mxu0 0.0
      %1726 = vmatmul.mubr.f32.gmra.mrb[0].mxu0 %v1525
      %v1727 = vpop.f32.mrb[0].mxu0
      %v1728 = vadd.f32 %v1417, %v1727
      %v1729 = vpop.f32.mrb[0].mxu0
      %v1730 = vadd.f32 %v1418, %v1729
      %1731 = vmatprep.mubr.f32.mxu0 0.0
      %1732 = vmatmul.mubr.f32.gmra.mrb[0].mxu0 %v1527
      %v1733 = vpop.f32.mrb[0].mxu0
      %v1734 = vadd.f32 %v1419, %v1733
      %v1735 = vpop.f32.mrb[0].mxu0
      %v1736 = vadd.f32 %v1420, %v1735
      %1737 = vdwg.mxu0
      %v1738 = vsel %vm565, %v1634, -inf
      %v1739 = vmax.f32 %v1632, %v1738
      %1740 = vmax.xlane.f32.xlu0 %v1739
      %v1741 = vpop.xlane.xlu0 %1740
      %v1742 = vsel %vm565, %v1640, -inf
      %v1743 = vmax.f32 %v1638, %v1742
      %1744 = vmax.xlane.f32.xlu0 %v1743
      %v1745 = vpop.xlane.xlu0 %1744
      %v1746 = vsel %vm565, %v1646, -inf
      %v1747 = vmax.f32 %v1644, %v1746
      %1748 = vmax.xlane.f32.xlu0 %v1747
      %v1749 = vpop.xlane.xlu0 %1748
      %v1750 = vsel %vm565, %v1652, -inf
      %v1751 = vmax.f32 %v1650, %v1750
      %1752 = vmax.xlane.f32.xlu0 %v1751
      %v1753 = vpop.xlane.xlu0 %1752
      %v1754 = vsel %vm565, %v1658, -inf
      %v1755 = vmax.f32 %v1656, %v1754
      %1756 = vmax.xlane.f32.xlu0 %v1755
      %v1757 = vpop.xlane.xlu0 %1756
      %v1758 = vsel %vm565, %v1664, -inf
      %v1759 = vmax.f32 %v1662, %v1758
      %1760 = vmax.xlane.f32.xlu0 %v1759
      %v1761 = vpop.xlane.xlu0 %1760
      %v1762 = vsel %vm565, %v1670, -inf
      %v1763 = vmax.f32 %v1668, %v1762
      %1764 = vmax.xlane.f32.xlu0 %v1763
      %v1765 = vpop.xlane.xlu0 %1764
      %v1766 = vsel %vm565, %v1676, -inf
      %v1767 = vmax.f32 %v1674, %v1766
      %1768 = vmax.xlane.f32.xlu0 %v1767
      %v1769 = vpop.xlane.xlu0 %1768
      %v1770 = vsel %vm565, %v1682, -inf
      %v1771 = vmax.f32 %v1680, %v1770
      %1772 = vmax.xlane.f32.xlu0 %v1771
      %v1773 = vpop.xlane.xlu0 %1772
      %v1774 = vsel %vm565, %v1688, -inf
      %v1775 = vmax.f32 %v1686, %v1774
      %1776 = vmax.xlane.f32.xlu0 %v1775
      %v1777 = vpop.xlane.xlu0 %1776
      %v1778 = vsel %vm565, %v1694, -inf
      %v1779 = vmax.f32 %v1692, %v1778
      %1780 = vmax.xlane.f32.xlu0 %v1779
      %v1781 = vpop.xlane.xlu0 %1780
      %v1782 = vsel %vm565, %v1700, -inf
      %v1783 = vmax.f32 %v1698, %v1782
      %1784 = vmax.xlane.f32.xlu0 %v1783
      %v1785 = vpop.xlane.xlu0 %1784
      %v1786 = vsel %vm565, %v1706, -inf
      %v1787 = vmax.f32 %v1704, %v1786
      %1788 = vmax.xlane.f32.xlu0 %v1787
      %v1789 = vpop.xlane.xlu0 %1788
      %v1790 = vsel %vm565, %v1712, -inf
      %v1791 = vmax.f32 %v1710, %v1790
      %1792 = vmax.xlane.f32.xlu0 %v1791
      %v1793 = vpop.xlane.xlu0 %1792
      %v1794 = vsel %vm565, %v1718, -inf
      %v1795 = vmax.f32 %v1716, %v1794
      %1796 = vmax.xlane.f32.xlu0 %v1795
      %v1797 = vpop.xlane.xlu0 %1796
      %v1798 = vsel %vm565, %v1724, -inf
      %v1799 = vmax.f32 %v1722, %v1798
      %1800 = vmax.xlane.f32.xlu0 %v1799
      %v1801 = vpop.xlane.xlu0 %1800
      %v1802 = vsel %vm565, %v1730, -inf
      %v1803 = vmax.f32 %v1728, %v1802
      %1804 = vmax.xlane.f32.xlu0 %v1803
      %v1805 = vpop.xlane.xlu0 %1804
      %v1806 = vsel %vm565, %v1736, -inf
      %v1807 = vmax.f32 %v1734, %v1806
      %1808 = vmax.xlane.f32.xlu0 %v1807
      %v1809 = vpop.xlane.xlu0 %1808
      %v1810 = vsub.f32 %v1632, %v1741
      %v1811 = vsub.f32 %v1634, %v1741
      %v1812 = vsub.f32 %v1638, %v1745
      %v1813 = vsub.f32 %v1640, %v1745
      %v1814 = vsub.f32 %v1644, %v1749
      %v1815 = vsub.f32 %v1646, %v1749
      %v1816 = vsub.f32 %v1650, %v1753
      %v1817 = vsub.f32 %v1652, %v1753
      %v1818 = vsub.f32 %v1656, %v1757
      %v1819 = vsub.f32 %v1658, %v1757
      %v1820 = vsub.f32 %v1662, %v1761
      %v1821 = vsub.f32 %v1664, %v1761
      %v1822 = vsub.f32 %v1668, %v1765
      %v1823 = vsub.f32 %v1670, %v1765
      %v1824 = vsub.f32 %v1674, %v1769
      %v1825 = vsub.f32 %v1676, %v1769
      %v1826 = vsub.f32 %v1680, %v1773
      %v1827 = vsub.f32 %v1682, %v1773
      %v1828 = vsub.f32 %v1686, %v1777
      %v1829 = vsub.f32 %v1688, %v1777
      %v1830 = vsub.f32 %v1692, %v1781
      %v1831 = vsub.f32 %v1694, %v1781
      %v1832 = vsub.f32 %v1698, %v1785
      %v1833 = vsub.f32 %v1700, %v1785
      %v1834 = vsub.f32 %v1704, %v1789
      %v1835 = vsub.f32 %v1706, %v1789
      %v1836 = vsub.f32 %v1710, %v1793
      %v1837 = vsub.f32 %v1712, %v1793
      %v1838 = vsub.f32 %v1716, %v1797
      %v1839 = vsub.f32 %v1718, %v1797
      %v1840 = vsub.f32 %v1722, %v1801
      %v1841 = vsub.f32 %v1724, %v1801
      %v1842 = vsub.f32 %v1728, %v1805
      %v1843 = vsub.f32 %v1730, %v1805
      %v1844 = vsub.f32 %v1734, %v1809
      %v1845 = vsub.f32 %v1736, %v1809
      %v1846 = vmul.f32 %v1810, 1.442695
      %v1847 = vpow.pop %v1846
      %v1848 = vmul.f32 %v1811, 1.442695
      %v1849 = vpow.pop %v1848
      %v1850 = vmul.f32 %v1812, 1.442695
      %v1851 = vpow.pop %v1850
      %v1852 = vmul.f32 %v1813, 1.442695
      %v1853 = vpow.pop %v1852
      %v1854 = vmul.f32 %v1814, 1.442695
      %v1855 = vpow.pop %v1854
      %v1856 = vmul.f32 %v1815, 1.442695
      %v1857 = vpow.pop %v1856
      %v1858 = vmul.f32 %v1816, 1.442695
      %v1859 = vpow.pop %v1858
      %v1860 = vmul.f32 %v1817, 1.442695
      %v1861 = vpow.pop %v1860
      %v1862 = vmul.f32 %v1818, 1.442695
      %v1863 = vpow.pop %v1862
      %v1864 = vmul.f32 %v1819, 1.442695
      %v1865 = vpow.pop %v1864
      %v1866 = vmul.f32 %v1820, 1.442695
      %v1867 = vpow.pop %v1866
      %v1868 = vmul.f32 %v1821, 1.442695
      %v1869 = vpow.pop %v1868
      %v1870 = vmul.f32 %v1822, 1.442695
      %v1871 = vpow.pop %v1870
      %v1872 = vmul.f32 %v1823, 1.442695
      %v1873 = vpow.pop %v1872
      %v1874 = vmul.f32 %v1824, 1.442695
      %v1875 = vpow.pop %v1874
      %v1876 = vmul.f32 %v1825, 1.442695
      %v1877 = vpow.pop %v1876
      %v1878 = vmul.f32 %v1826, 1.442695
      %v1879 = vpow.pop %v1878
      %v1880 = vmul.f32 %v1827, 1.442695
      %v1881 = vpow.pop %v1880
      %v1882 = vmul.f32 %v1828, 1.442695
      %v1883 = vpow.pop %v1882
      %v1884 = vmul.f32 %v1829, 1.442695
      %v1885 = vpow.pop %v1884
      %v1886 = vmul.f32 %v1830, 1.442695
      %v1887 = vpow.pop %v1886
      %v1888 = vmul.f32 %v1831, 1.442695
      %v1889 = vpow.pop %v1888
      %v1890 = vmul.f32 %v1832, 1.442695
      %v1891 = vpow.pop %v1890
      %v1892 = vmul.f32 %v1833, 1.442695
      %v1893 = vpow.pop %v1892
      %v1894 = vmul.f32 %v1834, 1.442695
      %v1895 = vpow.pop %v1894
      %v1896 = vmul.f32 %v1835, 1.442695
      %v1897 = vpow.pop %v1896
      %v1898 = vmul.f32 %v1836, 1.442695
      %v1899 = vpow.pop %v1898
      %v1900 = vmul.f32 %v1837, 1.442695
      %v1901 = vpow.pop %v1900
      %v1902 = vmul.f32 %v1838, 1.442695
      %v1903 = vpow.pop %v1902
      %v1904 = vmul.f32 %v1839, 1.442695
      %v1905 = vpow.pop %v1904
      %v1906 = vmul.f32 %v1840, 1.442695
      %v1907 = vpow.pop %v1906
      %v1908 = vmul.f32 %v1841, 1.442695
      %v1909 = vpow.pop %v1908
      %v1910 = vmul.f32 %v1842, 1.442695
      %v1911 = vpow.pop %v1910
      %v1912 = vmul.f32 %v1843, 1.442695
      %v1913 = vpow.pop %v1912
      %v1914 = vmul.f32 %v1844, 1.442695
      %v1915 = vpow.pop %v1914
      %v1916 = vmul.f32 %v1845, 1.442695
      %v1917 = vpow.pop %v1916
      %v1918 = vsel %vm565, %v1849, 0.0
      %v1919 = vadd.f32 %v1847, %v1918
      %1920 = vadd.xlane.f32.xlu0 %v1919
      %v1921 = vpop.xlane.xlu0 %1920
      %v1922 = vsel %vm565, %v1853, 0.0
      %v1923 = vadd.f32 %v1851, %v1922
      %1924 = vadd.xlane.f32.xlu0 %v1923
      %v1925 = vpop.xlane.xlu0 %1924
      %v1926 = vsel %vm565, %v1857, 0.0
      %v1927 = vadd.f32 %v1855, %v1926
      %1928 = vadd.xlane.f32.xlu0 %v1927
      %v1929 = vpop.xlane.xlu0 %1928
      %v1930 = vsel %vm565, %v1861, 0.0
      %v1931 = vadd.f32 %v1859, %v1930
      %1932 = vadd.xlane.f32.xlu0 %v1931
      %v1933 = vpop.xlane.xlu0 %1932
      %v1934 = vsel %vm565, %v1865, 0.0
      %v1935 = vadd.f32 %v1863, %v1934
      %1936 = vadd.xlane.f32.xlu0 %v1935
      %v1937 = vpop.xlane.xlu0 %1936
      %v1938 = vsel %vm565, %v1869, 0.0
      %v1939 = vadd.f32 %v1867, %v1938
      %1940 = vadd.xlane.f32.xlu0 %v1939
      %v1941 = vpop.xlane.xlu0 %1940
      %v1942 = vsel %vm565, %v1873, 0.0
      %v1943 = vadd.f32 %v1871, %v1942
      %1944 = vadd.xlane.f32.xlu0 %v1943
      %v1945 = vpop.xlane.xlu0 %1944
      %v1946 = vsel %vm565, %v1877, 0.0
      %v1947 = vadd.f32 %v1875, %v1946
      %1948 = vadd.xlane.f32.xlu0 %v1947
      %v1949 = vpop.xlane.xlu0 %1948
      %v1950 = vsel %vm565, %v1881, 0.0
      %v1951 = vadd.f32 %v1879, %v1950
      %1952 = vadd.xlane.f32.xlu0 %v1951
      %v1953 = vpop.xlane.xlu0 %1952
      %v1954 = vsel %vm565, %v1885, 0.0
      %v1955 = vadd.f32 %v1883, %v1954
      %1956 = vadd.xlane.f32.xlu0 %v1955
      %v1957 = vpop.xlane.xlu0 %1956
      %v1958 = vsel %vm565, %v1889, 0.0
      %v1959 = vadd.f32 %v1887, %v1958
      %1960 = vadd.xlane.f32.xlu0 %v1959
      %v1961 = vpop.xlane.xlu0 %1960
      %v1962 = vsel %vm565, %v1893, 0.0
      %v1963 = vadd.f32 %v1891, %v1962
      %1964 = vadd.xlane.f32.xlu0 %v1963
      %v1965 = vpop.xlane.xlu0 %1964
      %v1966 = vsel %vm565, %v1897, 0.0
      %v1967 = vadd.f32 %v1895, %v1966
      %1968 = vadd.xlane.f32.xlu0 %v1967
      %v1969 = vpop.xlane.xlu0 %1968
      %v1970 = vsel %vm565, %v1901, 0.0
      %v1971 = vadd.f32 %v1899, %v1970
      %1972 = vadd.xlane.f32.xlu0 %v1971
      %v1973 = vpop.xlane.xlu0 %1972
      %v1974 = vsel %vm565, %v1905, 0.0
      %v1975 = vadd.f32 %v1903, %v1974
      %1976 = vadd.xlane.f32.xlu0 %v1975
      %v1977 = vpop.xlane.xlu0 %1976
      %v1978 = vsel %vm565, %v1909, 0.0
      %v1979 = vadd.f32 %v1907, %v1978
      %1980 = vadd.xlane.f32.xlu0 %v1979
      %v1981 = vpop.xlane.xlu0 %1980
      %v1982 = vsel %vm565, %v1913, 0.0
      %v1983 = vadd.f32 %v1911, %v1982
      %1984 = vadd.xlane.f32.xlu0 %v1983
      %v1985 = vpop.xlane.xlu0 %1984
      %v1986 = vsel %vm565, %v1917, 0.0
      %v1987 = vadd.f32 %v1915, %v1986
      %1988 = vadd.xlane.f32.xlu0 %v1987
      %v1989 = vpop.xlane.xlu0 %1988
      %v1990 = vrcp.pop %v1921
      %v1991 = vrcp.pop %v1925
      %v1992 = vrcp.pop %v1929
      %v1993 = vrcp.pop %v1933
      %v1994 = vrcp.pop %v1937
      %v1995 = vrcp.pop %v1941
      %v1996 = vrcp.pop %v1945
      %v1997 = vrcp.pop %v1949
      %v1998 = vrcp.pop %v1953
      %v1999 = vrcp.pop %v1957
      %v2000 = vrcp.pop %v1961
      %v2001 = vrcp.pop %v1965
      %v2002 = vrcp.pop %v1969
      %v2003 = vrcp.pop %v1973
      %v2004 = vrcp.pop %v1977
      %v2005 = vrcp.pop %v1981
      %v2006 = vrcp.pop %v1985
      %v2007 = vrcp.pop %v1989
      %v2008 = vmul.f32 %v1847, %v1990
      %v2009 = vmul.f32 %v1849, %v1990
      %v2010 = vmul.f32 %v1851, %v1991
      %v2011 = vmul.f32 %v1853, %v1991
      %v2012 = vmul.f32 %v1855, %v1992
      %v2013 = vmul.f32 %v1857, %v1992
      %v2014 = vmul.f32 %v1859, %v1993
      %v2015 = vmul.f32 %v1861, %v1993
      %v2016 = vmul.f32 %v1863, %v1994
      %v2017 = vmul.f32 %v1865, %v1994
      %v2018 = vmul.f32 %v1867, %v1995
      %v2019 = vmul.f32 %v1869, %v1995
      %v2020 = vmul.f32 %v1871, %v1996
      %v2021 = vmul.f32 %v1873, %v1996
      %v2022 = vmul.f32 %v1875, %v1997
      %v2023 = vmul.f32 %v1877, %v1997
      %v2024 = vmul.f32 %v1879, %v1998
      %v2025 = vmul.f32 %v1881, %v1998
      %v2026 = vmul.f32 %v1883, %v1999
      %v2027 = vmul.f32 %v1885, %v1999
      %v2028 = vmul.f32 %v1887, %v2000
      %v2029 = vmul.f32 %v1889, %v2000
      %v2030 = vmul.f32 %v1891, %v2001
      %v2031 = vmul.f32 %v1893, %v2001
      %v2032 = vmul.f32 %v1895, %v2002
      %v2033 = vmul.f32 %v1897, %v2002
      %v2034 = vmul.f32 %v1899, %v2003
      %v2035 = vmul.f32 %v1901, %v2003
      %v2036 = vmul.f32 %v1903, %v2004
      %v2037 = vmul.f32 %v1905, %v2004
      %v2038 = vmul.f32 %v1907, %v2005
      %v2039 = vmul.f32 %v1909, %v2005
      %v2040 = vmul.f32 %v1911, %v2006
      %v2041 = vmul.f32 %v1913, %v2006
      %v2042 = vmul.f32 %v1915, %v2007
      %v2043 = vmul.f32 %v1917, %v2007
      %2044 = vrot.lane.b32.xlu0 %v405, 48
      %v2045 = vpop.permute.xlu0 %2044
      %2046 = vrot.lane.b32.xlu0 %v408, 48
      %v2047 = vpop.permute.xlu0 %2046
      %2048 = vrot.lane.b32.xlu0 %v413, 48
      %v2049 = vpop.permute.xlu0 %2048
      %2050 = vrot.lane.b32.xlu0 %v416, 48
      %v2051 = vpop.permute.xlu0 %2050
      %2052 = vrot.lane.b32.xlu0 %v421, 48
      %v2053 = vpop.permute.xlu0 %2052
      %2054 = vrot.lane.b32.xlu0 %v424, 48
      %v2055 = vpop.permute.xlu0 %2054
      %2056 = vrot.lane.b32.xlu0 %v429, 48
      %v2057 = vpop.permute.xlu0 %2056
      %2058 = vrot.lane.b32.xlu0 %v432, 48
      %v2059 = vpop.permute.xlu0 %2058
      %2060 = vrot.lane.b32.xlu0 %v437, 48
      %v2061 = vpop.permute.xlu0 %2060
      %2062 = vrot.lane.b32.xlu0 %v440, 48
      %v2063 = vpop.permute.xlu0 %2062
      %2064 = vrot.lane.b32.xlu0 %v445, 48
      %v2065 = vpop.permute.xlu0 %2064
      %2066 = vrot.lane.b32.xlu0 %v448, 48
      %v2067 = vpop.permute.xlu0 %2066
      %2068 = vrot.lane.b32.xlu0 %v453, 48
      %v2069 = vpop.permute.xlu0 %2068
      %2070 = vrot.lane.b32.xlu0 %v456, 48
      %v2071 = vpop.permute.xlu0 %2070
      %2072 = vrot.lane.b32.xlu0 %v461, 48
      %v2073 = vpop.permute.xlu0 %2072
      %2074 = vrot.lane.b32.xlu0 %v464, 48
      %v2075 = vpop.permute.xlu0 %2074
      %2076 = vrot.lane.b32.xlu0 %v469, 48
      %v2077 = vpop.permute.xlu0 %2076
      %2078 = vrot.lane.b32.xlu0 %v472, 48
      %v2079 = vpop.permute.xlu0 %2078
      %v2099 = vsel %vm565, %v2009, 0
      %v2102 = vsel %vm565, %v2011, 0
      %v2105 = vsel %vm565, %v2013, 0
      %v2108 = vsel %vm565, %v2015, 0
      %v2111 = vsel %vm565, %v2017, 0
      %v2114 = vsel %vm565, %v2019, 0
      %v2117 = vsel %vm565, %v2021, 0
      %v2120 = vsel %vm565, %v2023, 0
      %v2123 = vsel %vm565, %v2025, 0
      %v2126 = vsel %vm565, %v2027, 0
      %v2129 = vsel %vm565, %v2029, 0
      %v2132 = vsel %vm565, %v2031, 0
      %v2135 = vsel %vm565, %v2033, 0
      %v2138 = vsel %vm565, %v2035, 0
      %v2141 = vsel %vm565, %v2037, 0
      %v2144 = vsel %vm565, %v2039, 0
      %v2147 = vsel %vm565, %v2041, 0
      %v2150 = vsel %vm565, %v2043, 0
      %2152 = vmatprep.subr.mxu0 0.0
      %2153 = vmatpush1.msra.mxu0 %v2045
      %2154 = vmatprep.subr.mxu0 0.0
      %2155 = vmatpush1.msra.mxu0 %v2047
      %2156 = vmatprep.subr.mxu0 0.0
      %2157 = vmatpush1.msra.mxu0 %v2049
      %2158 = vmatprep.subr.mxu0 0.0
      %2159 = vmatpush1.msra.mxu0 %v2051
      %2160 = vmatprep.subr.mxu0 0.0
      %2161 = vmatpush1.msra.mxu0 %v2053
      %2162 = vmatprep.subr.mxu0 0.0
      %2163 = vmatpush1.msra.mxu0 %v2055
      %2164 = vmatprep.subr.mxu0 0.0
      %2165 = vmatpush1.msra.mxu0 %v2057
      %2166 = vmatprep.subr.mxu0 0.0
      %2167 = vmatpush1.msra.mxu0 %v2059
      %2168 = vmatprep.subr.mxu0 0.0
      %2169 = vmatpush1.msra.mxu0 %v2061
      %2170 = vmatprep.subr.mxu0 0.0
      %2171 = vmatpush1.msra.mxu0 %v2063
      %2172 = vmatprep.subr.mxu0 0.0
      %2173 = vmatpush1.msra.mxu0 %v2065
      %2174 = vmatprep.subr.mxu0 0.0
      %2175 = vmatpush1.msra.mxu0 %v2067
      %2176 = vmatprep.subr.mxu0 0.0
      %2177 = vmatpush1.msra.mxu0 %v2069
      %2178 = vmatprep.subr.mxu0 0.0
      %2179 = vmatpush1.msra.mxu0 %v2071
      %2180 = vmatprep.subr.mxu0 0.0
      %2181 = vmatpush1.msra.mxu0 %v2073
      %2182 = vmatprep.subr.mxu0 0.0
      %2183 = vmatpush1.msra.mxu0 %v2075
      %2184 = vmatprep.subr.mxu0 0.0
      %2185 = vmatpush1.msra.mxu0 %v2077
      %2186 = vmatprep.subr.mxu0 0.0
      %2187 = vmatpush1.msra.mxu0 %v2079
      %2188 = vmatprep.subr.mxu0 0.0
      %2189 = vmatpush1.msra.mxu0 0.0
      %2190 = vmatprep.subr.mxu0 0.0
      %2191 = vmatpush1.msra.mxu0 0.0
      %2192 = vmatprep.subr.mxu0 0.0
      %2193 = vmatpush1.msra.mxu0 0.0
      %2194 = vmatprep.subr.mxu0 0.0
      %2195 = vmatpush1.msra.mxu0 0.0
      %2196 = vmatprep.subr.mxu0 0.0
      %2197 = vmatpush1.msra.mxu0 0.0
      %2198 = vmatprep.subr.mxu0 0.0
      %2199 = vmatpush1.msra.mxu0 0.0
      %2200 = vmatprep.subr.mxu0 0.0
      %2201 = vmatpush1.msra.mxu0 0.0
      %2202 = vmatprep.subr.mxu0 0.0
      %2203 = vmatpush1.msra.mxu0 0.0
      %2204 = vmatprep.subr.mxu0 0.0
      %2205 = vmatpush1.msra.mxu0 0.0
      %2206 = vmatprep.subr.mxu0 0.0
      %2207 = vmatpush1.msra.mxu0 0.0
      %2208 = vmatprep.subr.mxu0 0.0
      %2209 = vmatpush1.msra.mxu0 0.0
      %2210 = vmatprep.subr.mxu0 0.0
      %2211 = vmatpush1.msra.mxu0 0.0
      %2212 = vmatprep.subr.mxu0 0.0
      %2213 = vmatpush1.msra.mxu0 0.0
      %2214 = vmatprep.subr.mxu0 0.0
      %2215 = vmatpush1.msra.mxu0 0.0
      %2216 = vmatprep.mubr.f32.mxu0 %v2099
      %2217 = vmatmul.mubr.f32.gmra.mrb[0].mxu0 %v2008
      %v2218 = vpop.f32.mrb[0].mxu0
      %v2219 = vadd.f32 0.0, %v2218
      %v2220 = vpop.f32.mrb[0].mxu0
      %2221 = vmatprep.mubr.f32.mxu0 %v2102
      %2222 = vmatmul.mubr.f32.gmra.mrb[0].mxu0 %v2010
      %v2223 = vpop.f32.mrb[0].mxu0
      %v2224 = vadd.f32 0.0, %v2223
      %v2225 = vpop.f32.mrb[0].mxu0
      %2226 = vmatprep.mubr.f32.mxu0 %v2105
      %2227 = vmatmul.mubr.f32.gmra.mrb[0].mxu0 %v2012
      %v2228 = vpop.f32.mrb[0].mxu0
      %v2229 = vadd.f32 0.0, %v2228
      %v2230 = vpop.f32.mrb[0].mxu0
      %2231 = vmatprep.mubr.f32.mxu0 %v2108
      %2232 = vmatmul.mubr.f32.gmra.mrb[0].mxu0 %v2014
      %v2233 = vpop.f32.mrb[0].mxu0
      %v2234 = vadd.f32 0.0, %v2233
      %v2235 = vpop.f32.mrb[0].mxu0
      %2236 = vmatprep.mubr.f32.mxu0 %v2111
      %2237 = vmatmul.mubr.f32.gmra.mrb[0].mxu0 %v2016
      %v2238 = vpop.f32.mrb[0].mxu0
      %v2239 = vadd.f32 0.0, %v2238
      %v2240 = vpop.f32.mrb[0].mxu0
      %2241 = vmatprep.mubr.f32.mxu0 %v2114
      %2242 = vmatmul.mubr.f32.gmra.mrb[0].mxu0 %v2018
      %v2243 = vpop.f32.mrb[0].mxu0
      %v2244 = vadd.f32 0.0, %v2243
      %v2245 = vpop.f32.mrb[0].mxu0
      %2246 = vmatprep.mubr.f32.mxu0 %v2117
      %2247 = vmatmul.mubr.f32.gmra.mrb[0].mxu0 %v2020
      %v2248 = vpop.f32.mrb[0].mxu0
      %v2249 = vadd.f32 0.0, %v2248
      %v2250 = vpop.f32.mrb[0].mxu0
      %2251 = vmatprep.mubr.f32.mxu0 %v2120
      %2252 = vmatmul.mubr.f32.gmra.mrb[0].mxu0 %v2022
      %v2253 = vpop.f32.mrb[0].mxu0
      %v2254 = vadd.f32 0.0, %v2253
      %v2255 = vpop.f32.mrb[0].mxu0
      %2256 = vmatprep.mubr.f32.mxu0 %v2123
      %2257 = vmatmul.mubr.f32.gmra.mrb[0].mxu0 %v2024
      %v2258 = vpop.f32.mrb[0].mxu0
      %v2259 = vadd.f32 0.0, %v2258
      %v2260 = vpop.f32.mrb[0].mxu0
      %2261 = vmatprep.mubr.f32.mxu0 %v2126
      %2262 = vmatmul.mubr.f32.gmra.mrb[0].mxu0 %v2026
      %v2263 = vpop.f32.mrb[0].mxu0
      %v2264 = vadd.f32 0.0, %v2263
      %v2265 = vpop.f32.mrb[0].mxu0
      %2266 = vmatprep.mubr.f32.mxu0 %v2129
      %2267 = vmatmul.mubr.f32.gmra.mrb[0].mxu0 %v2028
      %v2268 = vpop.f32.mrb[0].mxu0
      %v2269 = vadd.f32 0.0, %v2268
      %v2270 = vpop.f32.mrb[0].mxu0
      %2271 = vmatprep.mubr.f32.mxu0 %v2132
      %2272 = vmatmul.mubr.f32.gmra.mrb[0].mxu0 %v2030
      %v2273 = vpop.f32.mrb[0].mxu0
      %v2274 = vadd.f32 0.0, %v2273
      %v2275 = vpop.f32.mrb[0].mxu0
      %2276 = vmatprep.mubr.f32.mxu0 %v2135
      %2277 = vmatmul.mubr.f32.gmra.mrb[0].mxu0 %v2032
      %v2278 = vpop.f32.mrb[0].mxu0
      %v2279 = vadd.f32 0.0, %v2278
      %v2280 = vpop.f32.mrb[0].mxu0
      %2281 = vmatprep.mubr.f32.mxu0 %v2138
      %2282 = vmatmul.mubr.f32.gmra.mrb[0].mxu0 %v2034
      %v2283 = vpop.f32.mrb[0].mxu0
      %v2284 = vadd.f32 0.0, %v2283
      %v2285 = vpop.f32.mrb[0].mxu0
      %2286 = vmatprep.mubr.f32.mxu0 %v2141
      %2287 = vmatmul.mubr.f32.gmra.mrb[0].mxu0 %v2036
      %v2288 = vpop.f32.mrb[0].mxu0
      %v2289 = vadd.f32 0.0, %v2288
      %v2290 = vpop.f32.mrb[0].mxu0
      %2291 = vmatprep.mubr.f32.mxu0 %v2144
      %2292 = vmatmul.mubr.f32.gmra.mrb[0].mxu0 %v2038
      %v2293 = vpop.f32.mrb[0].mxu0
      %v2294 = vadd.f32 0.0, %v2293
      %v2295 = vpop.f32.mrb[0].mxu0
      %2296 = vmatprep.mubr.f32.mxu0 %v2147
      %2297 = vmatmul.mubr.f32.gmra.mrb[0].mxu0 %v2040
      %v2298 = vpop.f32.mrb[0].mxu0
      %v2299 = vadd.f32 0.0, %v2298
      %v2300 = vpop.f32.mrb[0].mxu0
      %2301 = vmatprep.mubr.f32.mxu0 %v2150
      %2302 = vmatmul.mubr.f32.gmra.mrb[0].mxu0 %v2042
      %v2303 = vpop.f32.mrb[0].mxu0
      %v2304 = vadd.f32 0.0, %v2303
      %v2305 = vpop.f32.mrb[0].mxu0
      %2306 = vdwg.mxu0
      %v2307 = vld [vmem:[%s3 + $0x8] sm:$0xf]
      %v2308 = vld [vmem:[%s3 + $0xc] sm:$0xf]
      %v2309 = vunpack.c.l.bf16 %v2307
      %v2310 = vunpack.c.l.bf16 %v2308
      %v2312 = vsel %vm565, %v2219, 0
      %v2315 = vsel %vm565, %v2224, 0
      %v2318 = vsel %vm565, %v2229, 0
      %v2321 = vsel %vm565, %v2234, 0
      %v2324 = vsel %vm565, %v2239, 0
      %v2327 = vsel %vm565, %v2244, 0
      %v2330 = vsel %vm565, %v2249, 0
      %v2333 = vsel %vm565, %v2254, 0
      %v2336 = vsel %vm565, %v2259, 0
      %v2339 = vsel %vm565, %v2264, 0
      %v2342 = vsel %vm565, %v2269, 0
      %v2345 = vsel %vm565, %v2274, 0
      %v2348 = vsel %vm565, %v2279, 0
      %v2351 = vsel %vm565, %v2284, 0
      %v2354 = vsel %vm565, %v2289, 0
      %v2357 = vsel %vm565, %v2294, 0
      %v2360 = vsel %vm565, %v2299, 0
      %v2363 = vsel %vm565, %v2304, 0
      %2365 = vmatprep.subr.mxu0 0.0
      %2366 = vmatpush1.msra.mxu0 %v2309
      %2367 = vmatprep.subr.mxu0 0.0
      %2368 = vmatpush1.msra.mxu0 %v2310
      %2369 = vmatprep.subr.mxu0 0.0
      %2370 = vmatpush1.msra.mxu0 0.0
      %2371 = vmatprep.subr.mxu0 0.0
      %2372 = vmatpush1.msra.mxu0 0.0
      %2373 = vmatprep.subr.mxu0 0.0
      %2374 = vmatpush1.msra.mxu0 0.0
      %2375 = vmatprep.subr.mxu0 0.0
      %2376 = vmatpush1.msra.mxu0 0.0
      %2377 = vmatprep.subr.mxu0 0.0
      %2378 = vmatpush1.msra.mxu0 0.0
      %2379 = vmatprep.subr.mxu0 0.0
      %2380 = vmatpush1.msra.mxu0 0.0
      %2381 = vmatprep.subr.mxu0 0.0
      %2382 = vmatpush1.msra.mxu0 0.0
      %2383 = vmatprep.subr.mxu0 0.0
      %2384 = vmatpush1.msra.mxu0 0.0
      %2385 = vmatprep.subr.mxu0 0.0
      %2386 = vmatpush1.msra.mxu0 0.0
      %2387 = vmatprep.subr.mxu0 0.0
      %2388 = vmatpush1.msra.mxu0 0.0
      %2389 = vmatprep.subr.mxu0 0.0
      %2390 = vmatpush1.msra.mxu0 0.0
      %2391 = vmatprep.subr.mxu0 0.0
      %2392 = vmatpush1.msra.mxu0 0.0
      %2393 = vmatprep.subr.mxu0 0.0
      %2394 = vmatpush1.msra.mxu0 0.0
      %2395 = vmatprep.subr.mxu0 0.0
      %2396 = vmatpush1.msra.mxu0 0.0
      %2397 = vmatprep.subr.mxu0 0.0
      %2398 = vmatpush1.msra.mxu0 0.0
      %2399 = vmatprep.subr.mxu0 0.0
      %2400 = vmatpush1.msra.mxu0 0.0
      %2401 = vmatprep.subr.mxu0 0.0
      %2402 = vmatpush1.msra.mxu0 0.0
      %2403 = vmatprep.subr.mxu0 0.0
      %2404 = vmatpush1.msra.mxu0 0.0
      %2405 = vmatprep.subr.mxu0 0.0
      %2406 = vmatpush1.msra.mxu0 0.0
      %2407 = vmatprep.subr.mxu0 0.0
      %2408 = vmatpush1.msra.mxu0 0.0
      %2409 = vmatprep.subr.mxu0 0.0
      %2410 = vmatpush1.msra.mxu0 0.0
      %2411 = vmatprep.subr.mxu0 0.0
      %2412 = vmatpush1.msra.mxu0 0.0
      %2413 = vmatprep.subr.mxu0 0.0
      %2414 = vmatpush1.msra.mxu0 0.0
      %2415 = vmatprep.subr.mxu0 0.0
      %2416 = vmatpush1.msra.mxu0 0.0
      %2417 = vmatprep.subr.mxu0 0.0
      %2418 = vmatpush1.msra.mxu0 0.0
      %2419 = vmatprep.subr.mxu0 0.0
      %2420 = vmatpush1.msra.mxu0 0.0
      %2421 = vmatprep.subr.mxu0 0.0
      %2422 = vmatpush1.msra.mxu0 0.0
      %2423 = vmatprep.subr.mxu0 0.0
      %2424 = vmatpush1.msra.mxu0 0.0
      %2425 = vmatprep.subr.mxu0 0.0
      %2426 = vmatpush1.msra.mxu0 0.0
      %2427 = vmatprep.subr.mxu0 0.0
      %2428 = vmatpush1.msra.mxu0 0.0
      %2429 = vmatprep.mubr.f32.mxu0 0.0
      %2430 = vmatmul.mubr.f32.gmra.mrb[0].mxu0 %v2312
      %v2431 = vpop.f32.mrb[0].mxu0
      %v2432 = vadd.f32 0.0, %v2431
      %v2433 = vpop.f32.mrb[0].mxu0
      %2434 = vmatprep.mubr.f32.mxu0 0.0
      %2435 = vmatmul.mubr.f32.gmra.mrb[0].mxu0 %v2315
      %v2436 = vpop.f32.mrb[0].mxu0
      %v2437 = vadd.f32 0.0, %v2436
      %v2438 = vpop.f32.mrb[0].mxu0
      %2439 = vmatprep.mubr.f32.mxu0 0.0
      %2440 = vmatmul.mubr.f32.gmra.mrb[0].mxu0 %v2318
      %v2441 = vpop.f32.mrb[0].mxu0
      %v2442 = vadd.f32 0.0, %v2441
      %v2443 = vpop.f32.mrb[0].mxu0
      %2444 = vmatprep.mubr.f32.mxu0 0.0
      %2445 = vmatmul.mubr.f32.gmra.mrb[0].mxu0 %v2321
      %v2446 = vpop.f32.mrb[0].mxu0
      %v2447 = vadd.f32 0.0, %v2446
      %v2448 = vpop.f32.mrb[0].mxu0
      %2449 = vmatprep.mubr.f32.mxu0 0.0
      %2450 = vmatmul.mubr.f32.gmra.mrb[0].mxu0 %v2324
      %v2451 = vpop.f32.mrb[0].mxu0
      %v2452 = vadd.f32 0.0, %v2451
      %v2453 = vpop.f32.mrb[0].mxu0
      %2454 = vmatprep.mubr.f32.mxu0 0.0
      %2455 = vmatmul.mubr.f32.gmra.mrb[0].mxu0 %v2327
      %v2456 = vpop.f32.mrb[0].mxu0
      %v2457 = vadd.f32 0.0, %v2456
      %v2458 = vpop.f32.mrb[0].mxu0
      %2459 = vmatprep.mubr.f32.mxu0 0.0
      %2460 = vmatmul.mubr.f32.gmra.mrb[0].mxu0 %v2330
      %v2461 = vpop.f32.mrb[0].mxu0
      %v2462 = vadd.f32 0.0, %v2461
      %v2463 = vpop.f32.mrb[0].mxu0
      %2464 = vmatprep.mubr.f32.mxu0 0.0
      %2465 = vmatmul.mubr.f32.gmra.mrb[0].mxu0 %v2333
      %v2466 = vpop.f32.mrb[0].mxu0
      %v2467 = vadd.f32 0.0, %v2466
      %v2468 = vpop.f32.mrb[0].mxu0
      %2469 = vmatprep.mubr.f32.mxu0 0.0
      %2470 = vmatmul.mubr.f32.gmra.mrb[0].mxu0 %v2336
      %v2471 = vpop.f32.mrb[0].mxu0
      %v2472 = vadd.f32 0.0, %v2471
      %v2473 = vpop.f32.mrb[0].mxu0
      %2474 = vmatprep.mubr.f32.mxu0 0.0
      %2475 = vmatmul.mubr.f32.gmra.mrb[0].mxu0 %v2339
      %v2476 = vpop.f32.mrb[0].mxu0
      %v2477 = vadd.f32 0.0, %v2476
      %v2478 = vpop.f32.mrb[0].mxu0
      %2479 = vmatprep.mubr.f32.mxu0 0.0
      %2480 = vmatmul.mubr.f32.gmra.mrb[0].mxu0 %v2342
      %v2481 = vpop.f32.mrb[0].mxu0
      %v2482 = vadd.f32 0.0, %v2481
      %v2483 = vpop.f32.mrb[0].mxu0
      %2484 = vmatprep.mubr.f32.mxu0 0.0
      %2485 = vmatmul.mubr.f32.gmra.mrb[0].mxu0 %v2345
      %v2486 = vpop.f32.mrb[0].mxu0
      %v2487 = vadd.f32 0.0, %v2486
      %v2488 = vpop.f32.mrb[0].mxu0
      %2489 = vmatprep.mubr.f32.mxu0 0.0
      %2490 = vmatmul.mubr.f32.gmra.mrb[0].mxu0 %v2348
      %v2491 = vpop.f32.mrb[0].mxu0
      %v2492 = vadd.f32 0.0, %v2491
      %v2493 = vpop.f32.mrb[0].mxu0
      %2494 = vmatprep.mubr.f32.mxu0 0.0
      %2495 = vmatmul.mubr.f32.gmra.mrb[0].mxu0 %v2351
      %v2496 = vpop.f32.mrb[0].mxu0
      %v2497 = vadd.f32 0.0, %v2496
      %v2498 = vpop.f32.mrb[0].mxu0
      %2499 = vmatprep.mubr.f32.mxu0 0.0
      %2500 = vmatmul.mubr.f32.gmra.mrb[0].mxu0 %v2354
      %v2501 = vpop.f32.mrb[0].mxu0
      %v2502 = vadd.f32 0.0, %v2501
      %v2503 = vpop.f32.mrb[0].mxu0
      %2504 = vmatprep.mubr.f32.mxu0 0.0
      %2505 = vmatmul.mubr.f32.gmra.mrb[0].mxu0 %v2357
      %v2506 = vpop.f32.mrb[0].mxu0
      %v2507 = vadd.f32 0.0, %v2506
      %v2508 = vpop.f32.mrb[0].mxu0
      %2509 = vmatprep.mubr.f32.mxu0 0.0
      %2510 = vmatmul.mubr.f32.gmra.mrb[0].mxu0 %v2360
      %v2511 = vpop.f32.mrb[0].mxu0
      %v2512 = vadd.f32 0.0, %v2511
      %v2513 = vpop.f32.mrb[0].mxu0
      %2514 = vmatprep.mubr.f32.mxu0 0.0
      %2515 = vmatmul.mubr.f32.gmra.mrb[0].mxu0 %v2363
      %v2516 = vpop.f32.mrb[0].mxu0
      %v2517 = vadd.f32 0.0, %v2516
      %v2518 = vpop.f32.mrb[0].mxu0
      %2519 = vdwg.mxu0
      %v2521 = vsel %vm565, %v1292, 0
      %v2524 = vsel %vm565, %v1297, 0
      %v2527 = vsel %vm565, %v1302, 0
      %v2530 = vsel %vm565, %v1307, 0
      %v2533 = vsel %vm565, %v1312, 0
      %v2536 = vsel %vm565, %v1317, 0
      %v2539 = vsel %vm565, %v1322, 0
      %v2542 = vsel %vm565, %v1327, 0
      %v2545 = vsel %vm565, %v1332, 0
      %v2548 = vsel %vm565, %v1337, 0
      %v2551 = vsel %vm565, %v1342, 0
      %v2554 = vsel %vm565, %v1347, 0
      %v2557 = vsel %vm565, %v1352, 0
      %v2560 = vsel %vm565, %v1357, 0
      %v2563 = vsel %vm565, %v1362, 0
      %v2566 = vsel %vm565, %v1367, 0
      %v2569 = vsel %vm565, %v1372, 0
      %v2572 = vsel %vm565, %v1377, 0
      %2574 = vmatprep.subr.mxu0 0.0
      %2575 = vmatpush1.msra.mxu0 %v1382
      %2576 = vmatprep.subr.mxu0 0.0
      %2577 = vmatpush1.msra.mxu0 %v1383
      %2578 = vmatprep.subr.mxu0 0.0
      %2579 = vmatpush1.msra.mxu0 0.0
      %2580 = vmatprep.subr.mxu0 0.0
      %2581 = vmatpush1.msra.mxu0 0.0
      %2582 = vmatprep.subr.mxu0 0.0
      %2583 = vmatpush1.msra.mxu0 0.0
      %2584 = vmatprep.subr.mxu0 0.0
      %2585 = vmatpush1.msra.mxu0 0.0
      %2586 = vmatprep.subr.mxu0 0.0
      %2587 = vmatpush1.msra.mxu0 0.0
      %2588 = vmatprep.subr.mxu0 0.0
      %2589 = vmatpush1.msra.mxu0 0.0
      %2590 = vmatprep.subr.mxu0 0.0
      %2591 = vmatpush1.msra.mxu0 0.0
      %2592 = vmatprep.subr.mxu0 0.0
      %2593 = vmatpush1.msra.mxu0 0.0
      %2594 = vmatprep.subr.mxu0 0.0
      %2595 = vmatpush1.msra.mxu0 0.0
      %2596 = vmatprep.subr.mxu0 0.0
      %2597 = vmatpush1.msra.mxu0 0.0
      %2598 = vmatprep.subr.mxu0 0.0
      %2599 = vmatpush1.msra.mxu0 0.0
      %2600 = vmatprep.subr.mxu0 0.0
      %2601 = vmatpush1.msra.mxu0 0.0
      %2602 = vmatprep.subr.mxu0 0.0
      %2603 = vmatpush1.msra.mxu0 0.0
      %2604 = vmatprep.subr.mxu0 0.0
      %2605 = vmatpush1.msra.mxu0 0.0
      %2606 = vmatprep.subr.mxu0 0.0
      %2607 = vmatpush1.msra.mxu0 0.0
      %2608 = vmatprep.subr.mxu0 0.0
      %2609 = vmatpush1.msra.mxu0 0.0
      %2610 = vmatprep.subr.mxu0 0.0
      %2611 = vmatpush1.msra.mxu0 0.0
      %2612 = vmatprep.subr.mxu0 0.0
      %2613 = vmatpush1.msra.mxu0 0.0
      %2614 = vmatprep.subr.mxu0 0.0
      %2615 = vmatpush1.msra.mxu0 0.0
      %2616 = vmatprep.subr.mxu0 0.0
      %2617 = vmatpush1.msra.mxu0 0.0
      %2618 = vmatprep.subr.mxu0 0.0
      %2619 = vmatpush1.msra.mxu0 0.0
      %2620 = vmatprep.subr.mxu0 0.0
      %2621 = vmatpush1.msra.mxu0 0.0
      %2622 = vmatprep.subr.mxu0 0.0
      %2623 = vmatpush1.msra.mxu0 0.0
      %2624 = vmatprep.subr.mxu0 0.0
      %2625 = vmatpush1.msra.mxu0 0.0
      %2626 = vmatprep.subr.mxu0 0.0
      %2627 = vmatpush1.msra.mxu0 0.0
      %2628 = vmatprep.subr.mxu0 0.0
      %2629 = vmatpush1.msra.mxu0 0.0
      %2630 = vmatprep.subr.mxu0 0.0
      %2631 = vmatpush1.msra.mxu0 0.0
      %2632 = vmatprep.subr.mxu0 0.0
      %2633 = vmatpush1.msra.mxu0 0.0
      %2634 = vmatprep.subr.mxu0 0.0
      %2635 = vmatpush1.msra.mxu0 0.0
      %2636 = vmatprep.subr.mxu0 0.0
      %2637 = vmatpush1.msra.mxu0 0.0
      %2638 = vmatprep.mubr.f32.mxu0 0.0
      %2639 = vmatmul.mubr.f32.gmra.mrb[0].mxu0 %v2521
      %v2640 = vpop.f32.mrb[0].mxu0
      %v2641 = vadd.f32 %v2432, %v2640
      %v2642 = vpop.f32.mrb[0].mxu0
      %2643 = vmatprep.mubr.f32.mxu0 0.0
      %2644 = vmatmul.mubr.f32.gmra.mrb[0].mxu0 %v2524
      %v2645 = vpop.f32.mrb[0].mxu0
      %v2646 = vadd.f32 %v2437, %v2645
      %v2647 = vpop.f32.mrb[0].mxu0
      %2648 = vmatprep.mubr.f32.mxu0 0.0
      %2649 = vmatmul.mubr.f32.gmra.mrb[0].mxu0 %v2527
      %v2650 = vpop.f32.mrb[0].mxu0
      %v2651 = vadd.f32 %v2442, %v2650
      %v2652 = vpop.f32.mrb[0].mxu0
      %2653 = vmatprep.mubr.f32.mxu0 0.0
      %2654 = vmatmul.mubr.f32.gmra.mrb[0].mxu0 %v2530
      %v2655 = vpop.f32.mrb[0].mxu0
      %v2656 = vadd.f32 %v2447, %v2655
      %v2657 = vpop.f32.mrb[0].mxu0
      %2658 = vmatprep.mubr.f32.mxu0 0.0
      %2659 = vmatmul.mubr.f32.gmra.mrb[0].mxu0 %v2533
      %v2660 = vpop.f32.mrb[0].mxu0
      %v2661 = vadd.f32 %v2452, %v2660
      %v2662 = vpop.f32.mrb[0].mxu0
      %2663 = vmatprep.mubr.f32.mxu0 0.0
      %2664 = vmatmul.mubr.f32.gmra.mrb[0].mxu0 %v2536
      %v2665 = vpop.f32.mrb[0].mxu0
      %v2666 = vadd.f32 %v2457, %v2665
      %v2667 = vpop.f32.mrb[0].mxu0
      %2668 = vmatprep.mubr.f32.mxu0 0.0
      %2669 = vmatmul.mubr.f32.gmra.mrb[0].mxu0 %v2539
      %v2670 = vpop.f32.mrb[0].mxu0
      %v2671 = vadd.f32 %v2462, %v2670
      %v2672 = vpop.f32.mrb[0].mxu0
      %2673 = vmatprep.mubr.f32.mxu0 0.0
      %2674 = vmatmul.mubr.f32.gmra.mrb[0].mxu0 %v2542
      %v2675 = vpop.f32.mrb[0].mxu0
      %v2676 = vadd.f32 %v2467, %v2675
      %v2677 = vpop.f32.mrb[0].mxu0
      %2678 = vmatprep.mubr.f32.mxu0 0.0
      %2679 = vmatmul.mubr.f32.gmra.mrb[0].mxu0 %v2545
      %v2680 = vpop.f32.mrb[0].mxu0
      %v2681 = vadd.f32 %v2472, %v2680
      %v2682 = vpop.f32.mrb[0].mxu0
      %2683 = vmatprep.mubr.f32.mxu0 0.0
      %2684 = vmatmul.mubr.f32.gmra.mrb[0].mxu0 %v2548
      %v2685 = vpop.f32.mrb[0].mxu0
      %v2686 = vadd.f32 %v2477, %v2685
      %v2687 = vpop.f32.mrb[0].mxu0
      %2688 = vmatprep.mubr.f32.mxu0 0.0
      %2689 = vmatmul.mubr.f32.gmra.mrb[0].mxu0 %v2551
      %v2690 = vpop.f32.mrb[0].mxu0
      %v2691 = vadd.f32 %v2482, %v2690
      %v2692 = vpop.f32.mrb[0].mxu0
      %2693 = vmatprep.mubr.f32.mxu0 0.0
      %2694 = vmatmul.mubr.f32.gmra.mrb[0].mxu0 %v2554
      %v2695 = vpop.f32.mrb[0].mxu0
      %v2696 = vadd.f32 %v2487, %v2695
      %v2697 = vpop.f32.mrb[0].mxu0
      %2698 = vmatprep.mubr.f32.mxu0 0.0
      %2699 = vmatmul.mubr.f32.gmra.mrb[0].mxu0 %v2557
      %v2700 = vpop.f32.mrb[0].mxu0
      %v2701 = vadd.f32 %v2492, %v2700
      %v2702 = vpop.f32.mrb[0].mxu0
      %2703 = vmatprep.mubr.f32.mxu0 0.0
      %2704 = vmatmul.mubr.f32.gmra.mrb[0].mxu0 %v2560
      %v2705 = vpop.f32.mrb[0].mxu0
      %v2706 = vadd.f32 %v2497, %v2705
      %v2707 = vpop.f32.mrb[0].mxu0
      %2708 = vmatprep.mubr.f32.mxu0 0.0
      %2709 = vmatmul.mubr.f32.gmra.mrb[0].mxu0 %v2563
      %v2710 = vpop.f32.mrb[0].mxu0
      %v2711 = vadd.f32 %v2502, %v2710
      %v2712 = vpop.f32.mrb[0].mxu0
      %2713 = vmatprep.mubr.f32.mxu0 0.0
      %2714 = vmatmul.mubr.f32.gmra.mrb[0].mxu0 %v2566
      %v2715 = vpop.f32.mrb[0].mxu0
      %v2716 = vadd.f32 %v2507, %v2715
      %v2717 = vpop.f32.mrb[0].mxu0
      %2718 = vmatprep.mubr.f32.mxu0 0.0
      %2719 = vmatmul.mubr.f32.gmra.mrb[0].mxu0 %v2569
      %v2720 = vpop.f32.mrb[0].mxu0
      %v2721 = vadd.f32 %v2512, %v2720
      %v2722 = vpop.f32.mrb[0].mxu0
      %2723 = vmatprep.mubr.f32.mxu0 0.0
      %2724 = vmatmul.mubr.f32.gmra.mrb[0].mxu0 %v2572
      %v2725 = vpop.f32.mrb[0].mxu0
      %v2726 = vadd.f32 %v2517, %v2725
      %v2727 = vpop.f32.mrb[0].mxu0
      %2728 = vdwg.mxu0
      %v2729 = vld [vmem:[%s4] sm:$0x1]
      %v2731 = vlaneseq
      %v2732 = vshrl.u32 %v2731, 7
      %v2733 = vsub.s32 0, %v2732
      %v2734 = vrot.slane %v2729, %v2733
      %v2736 = vadd.f32 %v2641, %v2734
      %v2737 = vadd.f32 %v2646, %v2734
      %v2738 = vadd.f32 %v2651, %v2734
      %v2739 = vadd.f32 %v2656, %v2734
      %v2740 = vadd.f32 %v2661, %v2734
      %v2741 = vadd.f32 %v2666, %v2734
      %v2742 = vadd.f32 %v2671, %v2734
      %v2743 = vadd.f32 %v2676, %v2734
      %v2744 = vadd.f32 %v2681, %v2734
      %v2745 = vadd.f32 %v2686, %v2734
      %v2746 = vadd.f32 %v2691, %v2734
      %v2747 = vadd.f32 %v2696, %v2734
      %v2748 = vadd.f32 %v2701, %v2734
      %v2749 = vadd.f32 %v2706, %v2734
      %v2750 = vadd.f32 %v2711, %v2734
      %v2751 = vadd.f32 %v2716, %v2734
      %v2752 = vadd.f32 %v2721, %v2734
      %v2753 = vadd.f32 %v2726, %v2734
      %2754 = vrot.lane.b32.xlu0 %v405, 32
      %v2755 = vpop.permute.xlu0 %2754
      %2756 = vrot.lane.b32.xlu0 %v408, 32
      %v2757 = vpop.permute.xlu0 %2756
      %2758 = vrot.lane.b32.xlu0 %v413, 32
      %v2759 = vpop.permute.xlu0 %2758
      %2760 = vrot.lane.b32.xlu0 %v416, 32
      %v2761 = vpop.permute.xlu0 %2760
      %2762 = vrot.lane.b32.xlu0 %v421, 32
      %v2763 = vpop.permute.xlu0 %2762
      %2764 = vrot.lane.b32.xlu0 %v424, 32
      %v2765 = vpop.permute.xlu0 %2764
      %2766 = vrot.lane.b32.xlu0 %v429, 32
      %v2767 = vpop.permute.xlu0 %2766
      %2768 = vrot.lane.b32.xlu0 %v432, 32
      %v2769 = vpop.permute.xlu0 %2768
      %2770 = vrot.lane.b32.xlu0 %v437, 32
      %v2771 = vpop.permute.xlu0 %2770
      %2772 = vrot.lane.b32.xlu0 %v440, 32
      %v2773 = vpop.permute.xlu0 %2772
      %2774 = vrot.lane.b32.xlu0 %v445, 32
      %v2775 = vpop.permute.xlu0 %2774
      %2776 = vrot.lane.b32.xlu0 %v448, 32
      %v2777 = vpop.permute.xlu0 %2776
      %2778 = vrot.lane.b32.xlu0 %v453, 32
      %v2779 = vpop.permute.xlu0 %2778
      %2780 = vrot.lane.b32.xlu0 %v456, 32
      %v2781 = vpop.permute.xlu0 %2780
      %2782 = vrot.lane.b32.xlu0 %v461, 32
      %v2783 = vpop.permute.xlu0 %2782
      %2784 = vrot.lane.b32.xlu0 %v464, 32
      %v2785 = vpop.permute.xlu0 %2784
      %2786 = vrot.lane.b32.xlu0 %v469, 32
      %v2787 = vpop.permute.xlu0 %2786
      %2788 = vrot.lane.b32.xlu0 %v472, 32
      %v2789 = vpop.permute.xlu0 %2788
      %v2808 = vsel %vm342, %v2736, %v2755
      %v2809 = vsel %vm342, %v2737, %v2757
      %v2810 = vsel %vm342, %v2738, %v2759
      %v2811 = vsel %vm342, %v2739, %v2761
      %v2812 = vsel %vm342, %v2740, %v2763
      %v2813 = vsel %vm342, %v2741, %v2765
      %v2814 = vsel %vm342, %v2742, %v2767
      %v2815 = vsel %vm342, %v2743, %v2769
      %v2816 = vsel %vm342, %v2744, %v2771
      %v2817 = vsel %vm342, %v2745, %v2773
      %v2818 = vsel %vm342, %v2746, %v2775
      %v2819 = vsel %vm342, %v2747, %v2777
      %v2820 = vsel %vm342, %v2748, %v2779
      %v2821 = vsel %vm342, %v2749, %v2781
      %v2822 = vsel %vm342, %v2750, %v2783
      %v2823 = vsel %vm342, %v2751, %v2785
      %v2824 = vsel %vm342, %v2752, %v2787
      %v2825 = vsel %vm342, %v2753, %v2789
      %vm2826 = vcmask 523264
      %2827 = vst.msk [vmem:[%s253] sm:$0xff] %vm2826, %v2808
      %2828 = vst.msk [vmem:[%s253 + $0x8] sm:$0xff] %vm2826, %v2809
      %2829 = vst.msk [vmem:[%s253 + $0x10] sm:$0xff] %vm2826, %v2810
      %2830 = vst.msk [vmem:[%s253 + $0x18] sm:$0xff] %vm2826, %v2811
      %2831 = vst.msk [vmem:[%s253 + $0x20] sm:$0xff] %vm2826, %v2812
      %2832 = vst.msk [vmem:[%s253 + $0x28] sm:$0xff] %vm2826, %v2813
      %2833 = vst.msk [vmem:[%s253 + $0x30] sm:$0xff] %vm2826, %v2814
      %2834 = vst.msk [vmem:[%s253 + $0x38] sm:$0xff] %vm2826, %v2815
      %2835 = vst.msk [vmem:[%s253 + $0x40] sm:$0xff] %vm2826, %v2816
      %2836 = vst.msk [vmem:[%s253 + $0x48] sm:$0xff] %vm2826, %v2817
      %2837 = vst.msk [vmem:[%s253 + $0x50] sm:$0xff] %vm2826, %v2818
      %2838 = vst.msk [vmem:[%s253 + $0x58] sm:$0xff] %vm2826, %v2819
      %2839 = vst.msk [vmem:[%s253 + $0x60] sm:$0xff] %vm2826, %v2820
      %2840 = vst.msk [vmem:[%s253 + $0x68] sm:$0xff] %vm2826, %v2821
      %2841 = vst.msk [vmem:[%s253 + $0x70] sm:$0xff] %vm2826, %v2822
      %2842 = vst.msk [vmem:[%s253 + $0x78] sm:$0xff] %vm2826, %v2823
      %2843 = vst.msk [vmem:[%s253 + $0x80] sm:$0xff] %vm2826, %v2824
      %2844 = vst.msk [vmem:[%s253 + $0x88] sm:$0xff] %vm2826, %v2825
      %s2845 = smul.u32 18, %s17
      %p2846 = scmp.lt.s32.totalorder %s2845, 35
      %s2847 = scalar_select %p2846, %s2845, 35
      %s2848 = smul.addr %s2847, 8
      %s2849 = scalar_lea.vmem %s6, %s2848
      // Predicated region
      $region45: #{_lambda_.1} parent=43 // pred_check
        %p2850 = pneg %p166
      $region46: #{_lambda_.1} parent=43 // pred_check_branch
        %2852 = sbr.rel (%p2850) target = $region48
      $region47: #{_lambda_.1} parent=43 // pred_region
        %s2853 = smul.u32 18, %s17
      $region48: #{_lambda_.1} parent=43 // pred_fallthru
        _
    $region44: #{_lambda_.1} parent=5 // pred_fallthru
      _
    %p2854 = scmp.le.s32.totalorder 2, %s12
    // Predicated region
    $region49: #{_lambda_.1} parent=5 // pred_check
      %p2855 = pneg %p2854
    $region50: #{_lambda_.1} parent=5 // pred_check_branch
      %2857 = sbr.rel (%p2855) target = $region52
    $region51: #{_lambda_.1} parent=5 // pred_region
      %s2858 = ssub.s32 %s12, 2
      // Predicated region
      $region53: #{_lambda_.1} parent=51 // pred_check
        %p2859 = pneg %p172
      $region54: #{_lambda_.1} parent=51 // pred_check_branch
        %2861 = sbr.rel (%p2859) target = $region56
      $region55: #{_lambda_.1} parent=51 // pred_region
        %s2862 = smul.u32 18, %s18
        %p2863 = scmp.lt.s32.totalorder %s2862, 35
        %s2864 = scalar_select %p2863, %s2862, 35
        %s2865 = smul.addr %s2864, 8
        %s2866 = scalar_lea.vmem %s6, %s2865
      $region56: #{_lambda_.1} parent=51 // pred_fallthru
        _
    $region52: #{_lambda_.1} parent=5 // pred_fallthru
      _
  $region6: #{_lambda_.1} parent=0 // loop_footer
    %s16 = sadd.s32 1, %s12
  $region7: #{_lambda_.1} parent=0 // loop_footer_branch
    %11 = sbr.rel target = $region3
  $region8: #{_lambda_.1} parent=0 // loop_exit
    _

</llo_original>
